<compile_context>
chip_gen: v6e
topology: v6e:2x2x1
jax: 0.10.0
libtpu: 0.0.40
codegen_flags: <defaults>
</compile_context>

<pallas_src>
import functools

import jax
import jax.numpy as jnp
from jax import lax
from jax.experimental import pallas as pl
from jax.experimental.pallas import tpu as pltpu


UB_GNN_LAYERS = 2     # LightGCN propagation layers
BB_GNN_LAYERS = 2     # SAGE layers (kernel below is written for 2)
D_PAD = 128           # embedding dim padded to a full lane width
F_PAD = 128           # raw feature dims padded to a full lane width
P_PAD = 128           # prediction count padded to a full lane width

# ---- packed weight slab block ids (each block = [D_PAD, D_PAD] bf16, already W^T) ----
_W_UB_USER, _W_UB_BOOK, _W_BB_PROJ = 0, 1, 2
_W_SAGE0_L, _W_SAGE0_R, _W_SAGE1_L, _W_SAGE1_R = 3, 4, 5, 6
_W_FUS1_A, _W_FUS1_B, _W_FUS2 = 7, 8, 9
_NUM_W_BLOCKS = 10

# ---- packed bias slab row ids (f32 [8, D_PAD]) ----
_B_UB_USER, _B_UB_BOOK, _B_BB_PROJ, _B_SAGE0, _B_SAGE1, _B_FUS1, _B_FUS2 = range(7)

_VMEM = pl.BlockSpec(memory_space=pltpu.MemorySpace.VMEM)


# ----------------------------- fused Pallas kernel -----------------------------

def _make_fused_kernel(nu, nb, ub_layers):
    n_total = nu + nb
    inv_layers = 1.0 / float(ub_layers + 1)
    f32, bf16 = jnp.float32, jnp.bfloat16

    def kernel(a_norm_ref, a_mean_ref, x_ref, w_ref, b_ref, idx_ref,
               user_out_ref, book_out_ref, pred_out_ref):

        def w_blk(k):                       # bf16 [D_PAD, D_PAD] — aligned static view
            return w_ref[k * D_PAD:(k + 1) * D_PAD, :]

        def b_row(k):                       # f32 [1, D_PAD]
            return b_ref[k:k + 1, :]

        x_user = x_ref[0:nu, :]             # bf16 [nu, F_PAD]
        x_book = x_ref[nu:n_total, :]       # bf16 [nb, F_PAD]
        x_bb = x_ref[n_total:n_total + nb, :]

        # ---------- UserBookGNN projections: x @ W^T + b ----------
        u0 = jnp.dot(x_user, w_blk(_W_UB_USER),
                     preferred_element_type=f32) + b_row(_B_UB_USER)
        b0 = jnp.dot(x_book, w_blk(_W_UB_BOOK),
                     preferred_element_type=f32) + b_row(_B_UB_BOOK)

        # ---------- LightGCN propagation + layer mean (register-resident) ----------
        a_norm = a_norm_ref[...]            # bf16 [n_total, n_total]
        cur = jnp.concatenate([u0, b0], axis=0)        # f32 [n_total, D_PAD]
        acc = cur
        for _ in range(ub_layers):
            cur = jnp.dot(a_norm, cur.astype(bf16), preferred_element_type=f32)
            acc = acc + cur
        mean = acc * inv_layers
        user_collab = mean[0:nu, :]
        book_collab = mean[nu:n_total, :]

        # ---------- BookBookGNN: SAGEConv(mean) + ReLU x2 (dropout = identity) ----------
        a_mean = a_mean_ref[...]            # bf16 [nb, nb]
        xb = jnp.dot(x_bb, w_blk(_W_BB_PROJ),
                     preferred_element_type=f32) + b_row(_B_BB_PROJ)
        for wl, wr, bl in ((_W_SAGE0_L, _W_SAGE0_R, _B_SAGE0),
                           (_W_SAGE1_L, _W_SAGE1_R, _B_SAGE1)):
            xb_bf = xb.astype(bf16)
            agg = jnp.dot(a_mean, xb_bf, preferred_element_type=f32)
            h = (jnp.dot(agg.astype(bf16), w_blk(wl), preferred_element_type=f32)
                 + b_row(bl)
                 + jnp.dot(xb_bf, w_blk(wr), preferred_element_type=f32))
            xb = jnp.maximum(h, 0.0)
        book_content = xb

        # ---------- Attention fusion ----------
        h = (jnp.dot(book_collab.astype(bf16), w_blk(_W_FUS1_A),
                     preferred_element_type=f32)
             + jnp.dot(book_content.astype(bf16), w_blk(_W_FUS1_B),
                       preferred_element_type=f32)
             + b_row(_B_FUS1))
        h = jnp.maximum(h, 0.0)
        # one fused matmul for both logits (W2^T lives in cols 0..1 of its block)
        logits = (jnp.dot(h.astype(bf16), w_blk(_W_FUS2),
                          preferred_element_type=f32) + b_row(_B_FUS2))
        l0 = logits[:, 0:1]
        l1 = logits[:, 1:2]
        m = jnp.maximum(l0, l1)
        e0 = jnp.exp(l0 - m)
        e1 = jnp.exp(l1 - m)
        inv = pl.reciprocal(e0 + e1, approx=True)
        book_final = (e0 * inv) * book_collab + (e1 * inv) * book_content

        user_out_ref[...] = user_collab     # lane-dense [nu, 128] store
        book_out_ref[...] = book_final      # lane-dense [nb, 128] store

        # ---------- Dot-product prediction (lane-dense one-hot gather) ----------
        uidx = idx_ref[0:1, :]              # int32 [1, P_PAD]
        bidx = idx_ref[1:2, :]
        oh_u = (lax.broadcasted_iota(jnp.int32, (nu, P_PAD), 0) == uidx).astype(bf16)
        oh_b = (lax.broadcasted_iota(jnp.int32, (nb, P_PAD), 0) == bidx).astype(bf16)
        dn = (((0,), (0,)), ((), ()))       # contract over the node dim
        u_sel = lax.dot_general(oh_u, user_collab.astype(bf16), dn,
                                preferred_element_type=f32)     # [P_PAD, D_PAD]
        b_sel = lax.dot_general(oh_b, book_final.astype(bf16), dn,
                                preferred_element_type=f32)     # [P_PAD, D_PAD]
        prod = u_sel * b_sel
        # lane-dense score row: [1, D_PAD] · [P_PAD, D_PAD]^T -> [1, P_PAD]
        pred_out_ref[...] = lax.dot_general(
            jnp.ones((1, D_PAD), f32), prod, (((1,), (1,)), ((), ())),
            preferred_element_type=f32)

    return kernel


# --------------------------- one-time param preparation -------------------------

def _pad2(a, rows, cols):
    out = jnp.zeros((rows, cols), jnp.float32)
    return out.at[:a.shape[0], :a.shape[1]].set(a.astype(jnp.float32))


def prepare_params(params, embed_dim):
    """Transpose / zero-pad / pack all weights and biases ONCE (not per call)."""
    d = embed_dim
    blocks = [None] * _NUM_W_BLOCKS
    blocks[_W_UB_USER] = params["ub_user_W"].T
    blocks[_W_UB_BOOK] = params["ub_book_W"].T
    blocks[_W_BB_PROJ] = params["bb_proj_W"].T
    blocks[_W_SAGE0_L] = params["sage0_Wl"].T
    blocks[_W_SAGE0_R] = params["sage0_Wr"].T
    blocks[_W_SAGE1_L] = params["sage1_Wl"].T
    blocks[_W_SAGE1_R] = params["sage1_Wr"].T
    blocks[_W_FUS1_A] = params["fus_W1"][:, :d].T
    blocks[_W_FUS1_B] = params["fus_W1"][:, d:].T
    blocks[_W_FUS2] = params["fus_W2"].T                   # [d, 2]
    w_slab = jnp.concatenate(
        [_pad2(b, D_PAD, D_PAD) for b in blocks], axis=0).astype(jnp.bfloat16)

    b_slab = jnp.zeros((8, D_PAD), jnp.float32)            # 8 sublane rows
    bias_rows = {
        _B_UB_USER: params["ub_user_b"], _B_UB_BOOK: params["ub_book_b"],
        _B_BB_PROJ: params["bb_proj_b"], _B_SAGE0: params["sage0_bl"],
        _B_SAGE1: params["sage1_bl"], _B_FUS1: params["fus_b1"],
        _B_FUS2: params["fus_b2"],
    }
    for r, v in bias_rows.items():
        b_slab = b_slab.at[r, :v.shape[0]].set(v.astype(jnp.float32))
    return w_slab, b_slab


# --------------------- one-time static-graph preprocessing (JAX) ----------------

def lightgcn_norm_adj(edge_index, n):
    """Dense A with A[dst, src] += deg^-0.5[src] * deg^-0.5[dst] (edge_weight=1)."""
    row, col = edge_index[0], edge_index[1]
    deg = jnp.zeros((n,), jnp.float32).at[col].add(1.0)
    dis = jnp.where(deg > 0.0, 1.0 / jnp.sqrt(jnp.maximum(deg, 1e-12)), 0.0)
    norm = dis[row] * dis[col]
    return jnp.zeros((n, n), jnp.float32).at[col, row].add(norm)


def mean_adj(edge_index, n):
    """Dense mean-aggregation matrix: row i averages src nodes of edges src->i."""
    row, col = edge_index[0], edge_index[1]
    cnt = jnp.zeros((n,), jnp.float32).at[col].add(1.0)
    a = jnp.zeros((n, n), jnp.float32).at[col, row].add(1.0)
    return a / jnp.maximum(cnt, 1.0)[:, None]


def build_ub_adjacency(rates_ei, implicit_ei, nu, nb):
    all_edges = jnp.concatenate([rates_ei, implicit_ei], axis=1)
    # Faithful to the reference _lightgcn_forward: the user->book destination
    # column is deliberately left UN-offset (exactly as the PyTorch code does).
    user_to_book = all_edges
    book_to_user = jnp.stack([all_edges[1] + nu, all_edges[0]])
    full_ei = jnp.concatenate([user_to_book, book_to_user], axis=1)
    return lightgcn_norm_adj(full_ei, nu + nb)


# ------------------------------ model forward (fused) ---------------------------

def _pad_cols(x, cols):
    out = jnp.zeros((x.shape[0], cols), x.dtype)
    return out.at[:, :x.shape[1]].set(x)


@functools.partial(jax.jit, static_argnames=("embed_dim",))
def dual_network_gnn_forward(w_slab, b_slab, a_norm_bf, a_mean_bf,
                             ub_user_x, ub_book_x, bb_book_x,
                             user_idx, book_idx, *, embed_dim):
    nu, nb = ub_user_x.shape[0], ub_book_x.shape[0]
    n_pred = user_idx.shape[0]

    # pack the three feature matrices into one bf16 slab (one DMA descriptor)
    x_slab = jnp.concatenate(
        [_pad_cols(ub_user_x, F_PAD),
         _pad_cols(ub_book_x, F_PAD),
         _pad_cols(bb_book_x, F_PAD)], axis=0).astype(jnp.bfloat16)

    # lane-dense index rows; -1 padding -> all-zero one-hot -> score 0
    idx = jnp.full((2, P_PAD), -1, jnp.int32)
    idx = idx.at[0, :n_pred].set(user_idx.astype(jnp.int32))
    idx = idx.at[1, :n_pred].set(book_idx.astype(jnp.int32))

    kernel = _make_fused_kernel(nu, nb, UB_GNN_LAYERS)
    user_pad, book_pad, pred_row = pl.pallas_call(
        kernel,
        out_shape=(jax.ShapeDtypeStruct((nu, D_PAD), jnp.float32),
                   jax.ShapeDtypeStruct((nb, D_PAD), jnp.float32),
                   jax.ShapeDtypeStruct((1, P_PAD), jnp.float32)),
        in_specs=[_VMEM] * 6,
        out_specs=(_VMEM, _VMEM, _VMEM),
    )(a_norm_bf, a_mean_bf, x_slab, w_slab, b_slab, idx)

    preds = pred_row[0, :n_pred]
    return preds, user_pad[:, :embed_dim], book_pad[:, :embed_dim]


# ------------------------------- pure-JAX reference -----------------------------

def reference_forward(params, a_norm, a_mean, ub_user_x, ub_book_x, bb_book_x,
                      user_idx, book_idx):
    u0 = ub_user_x @ params["ub_user_W"].T + params["ub_user_b"]
    b0 = ub_book_x @ params["ub_book_W"].T + params["ub_book_b"]
    nu = u0.shape[0]
    cur = jnp.concatenate([u0, b0], axis=0)
    embeds = [cur]
    for _ in range(UB_GNN_LAYERS):
        cur = a_norm @ cur
        embeds.append(cur)
    mean = jnp.mean(jnp.stack(embeds), axis=0)
    user_collab, book_collab = mean[:nu], mean[nu:]

    xb = bb_book_x @ params["bb_proj_W"].T + params["bb_proj_b"]
    for layer in range(BB_GNN_LAYERS):
        agg = a_mean @ xb
        xb = jax.nn.relu(agg @ params[f"sage{layer}_Wl"].T + params[f"sage{layer}_bl"]
                         + xb @ params[f"sage{layer}_Wr"].T)
    book_content = xb

    combined = jnp.concatenate([book_collab, book_content], axis=-1)
    h = jax.nn.relu(combined @ params["fus_W1"].T + params["fus_b1"])
    logits = h @ params["fus_W2"].T + params["fus_b2"]
    a = jax.nn.softmax(logits, axis=-1)
    book_final = a[:, 0:1] * book_collab + a[:, 1:2] * book_content

    preds = jnp.sum(user_collab[user_idx] * book_final[book_idx], axis=-1)
    return preds, user_collab, book_final


# ------------------------------------- init -------------------------------------

def _init_params(key, user_fdim, book_fdim, d, bb_layers=BB_GNN_LAYERS):
    keys = jax.random.split(key, 16)
    scale = 0.1
    p = {
        "ub_user_W": scale * jax.random.normal(keys[0], (d, user_fdim), jnp.float32),
        "ub_user_b": scale * jax.random.normal(keys[1], (d,), jnp.float32),
        "ub_book_W": scale * jax.random.normal(keys[2], (d, book_fdim), jnp.float32),
        "ub_book_b": scale * jax.random.normal(keys[3], (d,), jnp.float32),
        "bb_proj_W": scale * jax.random.normal(keys[4], (d, book_fdim), jnp.float32),
        "bb_proj_b": scale * jax.random.normal(keys[5], (d,), jnp.float32),
        "fus_W1": scale * jax.random.normal(keys[6], (d, 2 * d), jnp.float32),
        "fus_b1": scale * jax.random.normal(keys[7], (d,), jnp.float32),
        "fus_W2": scale * jax.random.normal(keys[8], (2, d), jnp.float32),
        "fus_b2": scale * jax.random.normal(keys[9], (2,), jnp.float32),
    }
    for layer in range(bb_layers):
        k = jax.random.split(keys[10 + layer], 3)
        p[f"sage{layer}_Wl"] = scale * jax.random.normal(k[0], (d, d), jnp.float32)
        p[f"sage{layer}_Wr"] = scale * jax.random.normal(k[1], (d, d), jnp.float32)
        p[f"sage{layer}_bl"] = scale * jax.random.normal(k[2], (d,), jnp.float32)
    return p


if __name__ == "__main__":
    key = jax.random.PRNGKey(0)
    (k_feat_u, k_feat_b, k_feat_bb, k_e1, k_e2, k_e3, k_e4,
     k_e5, k_e6, k_idx_u, k_idx_b, k_params) = jax.random.split(key, 12)

    num_users, num_books = 16, 24
    user_fdim, book_fdim, embed_dim = 12, 20, 32
    n_rates, n_implicit, n_bb_edges, n_pred = 40, 24, 60, 8

    # node features
    ub_user_x = jax.random.normal(k_feat_u, (num_users, user_fdim), jnp.float32)
    ub_book_x = jax.random.normal(k_feat_b, (num_books, book_fdim), jnp.float32)
    bb_book_x = jax.random.normal(k_feat_bb, (num_books, book_fdim), jnp.float32)

    # edge indices [2, E]
    rates_ei = jnp.stack([
        jax.random.randint(k_e1, (n_rates,), 0, num_users),
        jax.random.randint(k_e2, (n_rates,), 0, num_books)]).astype(jnp.int32)
    implicit_ei = jnp.stack([
        jax.random.randint(k_e3, (n_implicit,), 0, num_users),
        jax.random.randint(k_e4, (n_implicit,), 0, num_books)]).astype(jnp.int32)
    bb_ei = jnp.stack([
        jax.random.randint(k_e5, (n_bb_edges,), 0, num_books),
        jax.random.randint(k_e6, (n_bb_edges,), 0, num_books)]).astype(jnp.int32)

    user_idx = jax.random.randint(k_idx_u, (n_pred,), 0, num_users).astype(jnp.int32)
    book_idx = jax.random.randint(k_idx_b, (n_pred,), 0, num_books).astype(jnp.int32)

    params = _init_params(k_params, user_fdim, book_fdim, embed_dim)
    w_slab, b_slab = prepare_params(params, embed_dim)

    # static-graph preprocessing done ONCE (f32 for the reference, bf16 for MXU)
    a_norm = build_ub_adjacency(rates_ei, implicit_ei, num_users, num_books)
    a_mean = mean_adj(bb_ei, num_books)
    a_norm_bf = a_norm.astype(jnp.bfloat16)
    a_mean_bf = a_mean.astype(jnp.bfloat16)

    preds, user_embed, book_embed = dual_network_gnn_forward(
        w_slab, b_slab, a_norm_bf, a_mean_bf,
        ub_user_x, ub_book_x, bb_book_x, user_idx, book_idx,
        embed_dim=embed_dim)
    jax.block_until_ready((preds, user_embed, book_embed))

    assert preds.shape == (n_pred,)
    assert user_embed.shape == (num_users, embed_dim)
    assert book_embed.shape == (num_books, embed_dim)

    # numerical check against a pure-f32 JAX reference (tolerance widened to
    # account for bf16 MXU operands + approx-reciprocal softmax denominator)
    r_preds, r_user, r_book = reference_forward(
        params, a_norm, a_mean, ub_user_x, ub_book_x, bb_book_x, user_idx, book_idx)
    for got, want in ((preds, r_preds), (user_embed, r_user), (book_embed, r_book)):
        err = float(jnp.max(jnp.abs(got - want)))
        assert err < 5e-2, f"numerical mismatch vs reference: {err}"

    print("KERNEL_OK")
</pallas_src>

<mosaic_0001>
module attributes {stable_mosaic.version = 11 : i64} {
  func.func @kernel(%arg0: memref<40x40xbf16, #tpu.memory_space<vmem>>, %arg1: memref<24x24xbf16, #tpu.memory_space<vmem>>, %arg2: memref<64x128xbf16, #tpu.memory_space<vmem>>, %arg3: memref<1280x128xbf16, #tpu.memory_space<vmem>>, %arg4: memref<8x128xf32, #tpu.memory_space<vmem>>, %arg5: memref<2x128xi32, #tpu.memory_space<vmem>>, %arg6: memref<16x128xf32, #tpu.memory_space<vmem>>, %arg7: memref<24x128xf32, #tpu.memory_space<vmem>>, %arg8: memref<1x128xf32, #tpu.memory_space<vmem>>) attributes {dimension_semantics = [], scalar_prefetch = 0 : i64, scratch_operands = 0 : i64, tpu.core_type = #tpu.core_type<tc>} {
    %c0 = arith.constant 0 : index
    %c0_0 = arith.constant 0 : index
    %0 = vector.load %arg2[%c0, %c0_0] : memref<64x128xbf16, #tpu.memory_space<vmem>>, vector<16x128xbf16>
    %c16 = arith.constant 16 : index
    %c0_1 = arith.constant 0 : index
    %1 = vector.load %arg2[%c16, %c0_1] : memref<64x128xbf16, #tpu.memory_space<vmem>>, vector<24x128xbf16>
    %c40 = arith.constant 40 : index
    %c0_2 = arith.constant 0 : index
    %2 = vector.load %arg2[%c40, %c0_2] : memref<64x128xbf16, #tpu.memory_space<vmem>>, vector<24x128xbf16>
    %c0_3 = arith.constant 0 : index
    %c0_4 = arith.constant 0 : index
    %3 = vector.load %arg3[%c0_3, %c0_4] : memref<1280x128xbf16, #tpu.memory_space<vmem>>, vector<128x128xbf16>
    %cst = arith.constant dense<0.000000e+00> : vector<16x128xf32>
    %4 = tpu.matmul %0, %3, %cst {dimension_numbers = #tpu.dot_dimension_numbers<[1], [0], [0], [1], [0, 0, 1, 1], [], []>} : vector<16x128xbf16>, vector<128x128xbf16>, vector<16x128xf32> -> vector<16x128xf32>
    %c0_5 = arith.constant 0 : index
    %c0_6 = arith.constant 0 : index
    %5 = vector.load %arg4[%c0_5, %c0_6] : memref<8x128xf32, #tpu.memory_space<vmem>>, vector<1x128xf32>
    %6 = vector.broadcast %5 : vector<1x128xf32> to vector<16x128xf32>
    %7 = arith.addf %4, %6 : vector<16x128xf32>
    %c128 = arith.constant 128 : index
    %c0_7 = arith.constant 0 : index
    %8 = vector.load %arg3[%c128, %c0_7] : memref<1280x128xbf16, #tpu.memory_space<vmem>>, vector<128x128xbf16>
    %cst_8 = arith.constant dense<0.000000e+00> : vector<24x128xf32>
    %9 = tpu.matmul %1, %8, %cst_8 {dimension_numbers = #tpu.dot_dimension_numbers<[1], [0], [0], [1], [0, 0, 1, 1], [], []>} : vector<24x128xbf16>, vector<128x128xbf16>, vector<24x128xf32> -> vector<24x128xf32>
    %c1 = arith.constant 1 : index
    %c0_9 = arith.constant 0 : index
    %10 = vector.load %arg4[%c1, %c0_9] : memref<8x128xf32, #tpu.memory_space<vmem>>, vector<1x128xf32>
    %11 = vector.broadcast %10 : vector<1x128xf32> to vector<24x128xf32>
    %12 = arith.addf %9, %11 : vector<24x128xf32>
    %c0_10 = arith.constant 0 : index
    %c0_11 = arith.constant 0 : index
    %13 = vector.load %arg0[%c0_10, %c0_11] : memref<40x40xbf16, #tpu.memory_space<vmem>>, vector<40x40xbf16>
    %14 = tpu.concatenate %7, %12 in 0 : vector<16x128xf32>, vector<24x128xf32> -> vector<40x128xf32>
    %15 = arith.truncf %14 : vector<40x128xf32> to vector<40x128xbf16>
    %cst_12 = arith.constant dense<0.000000e+00> : vector<40x128xf32>
    %16 = tpu.matmul %13, %15, %cst_12 {dimension_numbers = #tpu.dot_dimension_numbers<[1], [0], [0], [1], [0, 0, 1, 1], [], []>} : vector<40x40xbf16>, vector<40x128xbf16>, vector<40x128xf32> -> vector<40x128xf32>
    %17 = arith.addf %14, %16 : vector<40x128xf32>
    %18 = arith.truncf %16 : vector<40x128xf32> to vector<40x128xbf16>
    %cst_13 = arith.constant dense<0.000000e+00> : vector<40x128xf32>
    %19 = tpu.matmul %13, %18, %cst_13 {dimension_numbers = #tpu.dot_dimension_numbers<[1], [0], [0], [1], [0, 0, 1, 1], [], []>} : vector<40x40xbf16>, vector<40x128xbf16>, vector<40x128xf32> -> vector<40x128xf32>
    %20 = arith.addf %17, %19 : vector<40x128xf32>
    %cst_14 = arith.constant 0.333333343 : f32
    %21 = vector.broadcast %cst_14 : f32 to vector<40x128xf32>
    %22 = arith.mulf %20, %21 : vector<40x128xf32>
    %23 = vector.extract_strided_slice %22 {offsets = [0, 0], sizes = [16, 128], strides = [1, 1]} : vector<40x128xf32> to vector<16x128xf32>
    %24 = vector.extract_strided_slice %22 {offsets = [16, 0], sizes = [24, 128], strides = [1, 1]} : vector<40x128xf32> to vector<24x128xf32>
    %c0_15 = arith.constant 0 : index
    %c0_16 = arith.constant 0 : index
    %25 = vector.load %arg1[%c0_15, %c0_16] : memref<24x24xbf16, #tpu.memory_space<vmem>>, vector<24x24xbf16>
    %c256 = arith.constant 256 : index
    %c0_17 = arith.constant 0 : index
    %26 = vector.load %arg3[%c256, %c0_17] : memref<1280x128xbf16, #tpu.memory_space<vmem>>, vector<128x128xbf16>
    %cst_18 = arith.constant dense<0.000000e+00> : vector<24x128xf32>
    %27 = tpu.matmul %2, %26, %cst_18 {dimension_numbers = #tpu.dot_dimension_numbers<[1], [0], [0], [1], [0, 0, 1, 1], [], []>} : vector<24x128xbf16>, vector<128x128xbf16>, vector<24x128xf32> -> vector<24x128xf32>
    %c2 = arith.constant 2 : index
    %c0_19 = arith.constant 0 : index
    %28 = vector.load %arg4[%c2, %c0_19] : memref<8x128xf32, #tpu.memory_space<vmem>>, vector<1x128xf32>
    %29 = vector.broadcast %28 : vector<1x128xf32> to vector<24x128xf32>
    %30 = arith.addf %27, %29 : vector<24x128xf32>
    %31 = arith.truncf %30 : vector<24x128xf32> to vector<24x128xbf16>
    %cst_20 = arith.constant dense<0.000000e+00> : vector<24x128xf32>
    %32 = tpu.matmul %25, %31, %cst_20 {dimension_numbers = #tpu.dot_dimension_numbers<[1], [0], [0], [1], [0, 0, 1, 1], [], []>} : vector<24x24xbf16>, vector<24x128xbf16>, vector<24x128xf32> -> vector<24x128xf32>
    %33 = arith.truncf %32 : vector<24x128xf32> to vector<24x128xbf16>
    %c384 = arith.constant 384 : index
    %c0_21 = arith.constant 0 : index
    %34 = vector.load %arg3[%c384, %c0_21] : memref<1280x128xbf16, #tpu.memory_space<vmem>>, vector<128x128xbf16>
    %cst_22 = arith.constant dense<0.000000e+00> : vector<24x128xf32>
    %35 = tpu.matmul %33, %34, %cst_22 {dimension_numbers = #tpu.dot_dimension_numbers<[1], [0], [0], [1], [0, 0, 1, 1], [], []>} : vector<24x128xbf16>, vector<128x128xbf16>, vector<24x128xf32> -> vector<24x128xf32>
    %c3 = arith.constant 3 : index
    %c0_23 = arith.constant 0 : index
    %36 = vector.load %arg4[%c3, %c0_23] : memref<8x128xf32, #tpu.memory_space<vmem>>, vector<1x128xf32>
    %37 = vector.broadcast %36 : vector<1x128xf32> to vector<24x128xf32>
    %38 = arith.addf %35, %37 : vector<24x128xf32>
    %c512 = arith.constant 512 : index
    %c0_24 = arith.constant 0 : index
    %39 = vector.load %arg3[%c512, %c0_24] : memref<1280x128xbf16, #tpu.memory_space<vmem>>, vector<128x128xbf16>
    %cst_25 = arith.constant dense<0.000000e+00> : vector<24x128xf32>
    %40 = tpu.matmul %31, %39, %cst_25 {dimension_numbers = #tpu.dot_dimension_numbers<[1], [0], [0], [1], [0, 0, 1, 1], [], []>} : vector<24x128xbf16>, vector<128x128xbf16>, vector<24x128xf32> -> vector<24x128xf32>
    %41 = arith.addf %38, %40 : vector<24x128xf32>
    %cst_26 = arith.constant 0.000000e+00 : f32
    %42 = vector.broadcast %cst_26 : f32 to vector<24x128xf32>
    %43 = arith.maximumf %41, %42 : vector<24x128xf32>
    %44 = arith.truncf %43 : vector<24x128xf32> to vector<24x128xbf16>
    %cst_27 = arith.constant dense<0.000000e+00> : vector<24x128xf32>
    %45 = tpu.matmul %25, %44, %cst_27 {dimension_numbers = #tpu.dot_dimension_numbers<[1], [0], [0], [1], [0, 0, 1, 1], [], []>} : vector<24x24xbf16>, vector<24x128xbf16>, vector<24x128xf32> -> vector<24x128xf32>
    %46 = arith.truncf %45 : vector<24x128xf32> to vector<24x128xbf16>
    %c640 = arith.constant 640 : index
    %c0_28 = arith.constant 0 : index
    %47 = vector.load %arg3[%c640, %c0_28] : memref<1280x128xbf16, #tpu.memory_space<vmem>>, vector<128x128xbf16>
    %cst_29 = arith.constant dense<0.000000e+00> : vector<24x128xf32>
    %48 = tpu.matmul %46, %47, %cst_29 {dimension_numbers = #tpu.dot_dimension_numbers<[1], [0], [0], [1], [0, 0, 1, 1], [], []>} : vector<24x128xbf16>, vector<128x128xbf16>, vector<24x128xf32> -> vector<24x128xf32>
    %c4 = arith.constant 4 : index
    %c0_30 = arith.constant 0 : index
    %49 = vector.load %arg4[%c4, %c0_30] : memref<8x128xf32, #tpu.memory_space<vmem>>, vector<1x128xf32>
    %50 = vector.broadcast %49 : vector<1x128xf32> to vector<24x128xf32>
    %51 = arith.addf %48, %50 : vector<24x128xf32>
    %c768 = arith.constant 768 : index
    %c0_31 = arith.constant 0 : index
    %52 = vector.load %arg3[%c768, %c0_31] : memref<1280x128xbf16, #tpu.memory_space<vmem>>, vector<128x128xbf16>
    %cst_32 = arith.constant dense<0.000000e+00> : vector<24x128xf32>
    %53 = tpu.matmul %44, %52, %cst_32 {dimension_numbers = #tpu.dot_dimension_numbers<[1], [0], [0], [1], [0, 0, 1, 1], [], []>} : vector<24x128xbf16>, vector<128x128xbf16>, vector<24x128xf32> -> vector<24x128xf32>
    %54 = arith.addf %51, %53 : vector<24x128xf32>
    %cst_33 = arith.constant 0.000000e+00 : f32
    %55 = vector.broadcast %cst_33 : f32 to vector<24x128xf32>
    %56 = arith.maximumf %54, %55 : vector<24x128xf32>
    %57 = arith.truncf %24 : vector<24x128xf32> to vector<24x128xbf16>
    %c896 = arith.constant 896 : index
    %c0_34 = arith.constant 0 : index
    %58 = vector.load %arg3[%c896, %c0_34] : memref<1280x128xbf16, #tpu.memory_space<vmem>>, vector<128x128xbf16>
    %cst_35 = arith.constant dense<0.000000e+00> : vector<24x128xf32>
    %59 = tpu.matmul %57, %58, %cst_35 {dimension_numbers = #tpu.dot_dimension_numbers<[1], [0], [0], [1], [0, 0, 1, 1], [], []>} : vector<24x128xbf16>, vector<128x128xbf16>, vector<24x128xf32> -> vector<24x128xf32>
    %60 = arith.truncf %56 : vector<24x128xf32> to vector<24x128xbf16>
    %c1024 = arith.constant 1024 : index
    %c0_36 = arith.constant 0 : index
    %61 = vector.load %arg3[%c1024, %c0_36] : memref<1280x128xbf16, #tpu.memory_space<vmem>>, vector<128x128xbf16>
    %cst_37 = arith.constant dense<0.000000e+00> : vector<24x128xf32>
    %62 = tpu.matmul %60, %61, %cst_37 {dimension_numbers = #tpu.dot_dimension_numbers<[1], [0], [0], [1], [0, 0, 1, 1], [], []>} : vector<24x128xbf16>, vector<128x128xbf16>, vector<24x128xf32> -> vector<24x128xf32>
    %63 = arith.addf %59, %62 : vector<24x128xf32>
    %c5 = arith.constant 5 : index
    %c0_38 = arith.constant 0 : index
    %64 = vector.load %arg4[%c5, %c0_38] : memref<8x128xf32, #tpu.memory_space<vmem>>, vector<1x128xf32>
    %65 = vector.broadcast %64 : vector<1x128xf32> to vector<24x128xf32>
    %66 = arith.addf %63, %65 : vector<24x128xf32>
    %cst_39 = arith.constant 0.000000e+00 : f32
    %67 = vector.broadcast %cst_39 : f32 to vector<24x128xf32>
    %68 = arith.maximumf %66, %67 : vector<24x128xf32>
    %69 = arith.truncf %68 : vector<24x128xf32> to vector<24x128xbf16>
    %c1152 = arith.constant 1152 : index
    %c0_40 = arith.constant 0 : index
    %70 = vector.load %arg3[%c1152, %c0_40] : memref<1280x128xbf16, #tpu.memory_space<vmem>>, vector<128x128xbf16>
    %cst_41 = arith.constant dense<0.000000e+00> : vector<24x128xf32>
    %71 = tpu.matmul %69, %70, %cst_41 {dimension_numbers = #tpu.dot_dimension_numbers<[1], [0], [0], [1], [0, 0, 1, 1], [], []>} : vector<24x128xbf16>, vector<128x128xbf16>, vector<24x128xf32> -> vector<24x128xf32>
    %c6 = arith.constant 6 : index
    %c0_42 = arith.constant 0 : index
    %72 = vector.load %arg4[%c6, %c0_42] : memref<8x128xf32, #tpu.memory_space<vmem>>, vector<1x128xf32>
    %73 = vector.broadcast %72 : vector<1x128xf32> to vector<24x128xf32>
    %74 = arith.addf %71, %73 : vector<24x128xf32>
    %75 = vector.extract_strided_slice %74 {offsets = [0, 0], sizes = [24, 1], strides = [1, 1]} : vector<24x128xf32> to vector<24x1xf32>
    %76 = vector.extract_strided_slice %74 {offsets = [0, 1], sizes = [24, 1], strides = [1, 1]} : vector<24x128xf32> to vector<24x1xf32>
    %77 = arith.maximumf %75, %76 : vector<24x1xf32>
    %78 = arith.subf %75, %77 : vector<24x1xf32>
    %79 = math.exp %78 : vector<24x1xf32>
    %80 = arith.subf %76, %77 : vector<24x1xf32>
    %81 = math.exp %80 : vector<24x1xf32>
    %82 = arith.addf %79, %81 : vector<24x1xf32>
    %83 = tpu.reciprocal %82 {approx = true} : vector<24x1xf32> -> vector<24x1xf32>
    %84 = arith.mulf %79, %83 : vector<24x1xf32>
    %85 = vector.broadcast %84 : vector<24x1xf32> to vector<24x128xf32>
    %86 = arith.mulf %85, %24 : vector<24x128xf32>
    %87 = arith.mulf %81, %83 : vector<24x1xf32>
    %88 = vector.broadcast %87 : vector<24x1xf32> to vector<24x128xf32>
    %89 = arith.mulf %88, %56 : vector<24x128xf32>
    %90 = arith.addf %86, %89 : vector<24x128xf32>
    %c0_43 = arith.constant 0 : index
    %c0_44 = arith.constant 0 : index
    %91 = vector.load %arg6[%c0_43, %c0_44] : memref<16x128xf32, #tpu.memory_space<vmem>>, vector<16x128xf32>
    tpu.vector_store %arg6[%c0_43, %c0_44], %23 {strides = array<i32>} : memref<16x128xf32, #tpu.memory_space<vmem>>, vector<16x128xf32>,
    %c0_45 = arith.constant 0 : index
    %c0_46 = arith.constant 0 : index
    %92 = vector.load %arg7[%c0_45, %c0_46] : memref<24x128xf32, #tpu.memory_space<vmem>>, vector<24x128xf32>
    tpu.vector_store %arg7[%c0_45, %c0_46], %90 {strides = array<i32>} : memref<24x128xf32, #tpu.memory_space<vmem>>, vector<24x128xf32>,
    %c0_47 = arith.constant 0 : index
    %c0_48 = arith.constant 0 : index
    %93 = vector.load %arg5[%c0_47, %c0_48] : memref<2x128xi32, #tpu.memory_space<vmem>>, vector<1x128xi32>
    %c1_49 = arith.constant 1 : index
    %c0_50 = arith.constant 0 : index
    %94 = vector.load %arg5[%c1_49, %c0_50] : memref<2x128xi32, #tpu.memory_space<vmem>>, vector<1x128xi32>
    %95 = tpu.iota {dimensions = array<i32: 0>} : vector<16x128xi32>
    %96 = vector.broadcast %93 : vector<1x128xi32> to vector<16x128xi32>
    %97 = arith.cmpi eq, %95, %96 : vector<16x128xi32>
    %98 = arith.extui %97 : vector<16x128xi1> to vector<16x128xi32>
    %99 = arith.sitofp %98 : vector<16x128xi32> to vector<16x128xf32>
    %100 = arith.truncf %99 : vector<16x128xf32> to vector<16x128xbf16>
    %101 = tpu.iota {dimensions = array<i32: 0>} : vector<24x128xi32>
    %102 = vector.broadcast %94 : vector<1x128xi32> to vector<24x128xi32>
    %103 = arith.cmpi eq, %101, %102 : vector<24x128xi32>
    %104 = arith.extui %103 : vector<24x128xi1> to vector<24x128xi32>
    %105 = arith.sitofp %104 : vector<24x128xi32> to vector<24x128xf32>
    %106 = arith.truncf %105 : vector<24x128xf32> to vector<24x128xbf16>
    %107 = arith.truncf %23 : vector<16x128xf32> to vector<16x128xbf16>
    %cst_51 = arith.constant dense<0.000000e+00> : vector<128x128xf32>
    %108 = tpu.matmul %100, %107, %cst_51 {dimension_numbers = #tpu.dot_dimension_numbers<[0], [0], [1], [1], [0, 1, 1, 1], [], []>} : vector<16x128xbf16>, vector<16x128xbf16>, vector<128x128xf32> -> vector<128x128xf32>
    %109 = arith.truncf %90 : vector<24x128xf32> to vector<24x128xbf16>
    %cst_52 = arith.constant dense<0.000000e+00> : vector<128x128xf32>
    %110 = tpu.matmul %106, %109, %cst_52 {dimension_numbers = #tpu.dot_dimension_numbers<[0], [0], [1], [1], [0, 1, 1, 1], [], []>} : vector<24x128xbf16>, vector<24x128xbf16>, vector<128x128xf32> -> vector<128x128xf32>
    %111 = arith.mulf %108, %110 : vector<128x128xf32>
    %cst_53 = arith.constant 1.000000e+00 : f32
    %112 = vector.broadcast %cst_53 : f32 to vector<1x128xf32>
    %cst_54 = arith.constant dense<0.000000e+00> : vector<1x128xf32>
    %113 = tpu.matmul %112, %111, %cst_54 {dimension_numbers = #tpu.dot_dimension_numbers<[1], [1], [0], [0], [0, 0, 1, 0], [], []>} : vector<1x128xf32>, vector<128x128xf32>, vector<1x128xf32> -> vector<1x128xf32>
    %c0_55 = arith.constant 0 : index
    %c0_56 = arith.constant 0 : index
    %114 = vector.load %arg8[%c0_55, %c0_56] : memref<1x128xf32, #tpu.memory_space<vmem>>, vector<1x128xf32>
    tpu.vector_store %arg8[%c0_55, %c0_56], %113 {strides = array<i32>} : memref<1x128xf32, #tpu.memory_space<vmem>>, vector<1x128xf32>,
    return
  }
}

</mosaic_0001>

<llo_original>
// kernel: dual_network_gnn_forward.1
$region0: #{dual_network_gnn_forward.1}
  #allocation0 [shape = 'u32[]', space=smem, size = 0x4, offset = 0x4, fixed_abs, tag = 'smem constant byte address 0x4 - core index']
  #allocation1 [shape = 'u32[144,128]{1,0:T(1,128)}', space=vmem, size = 0x12000, scoped, tag = 'internal scratch']
  %s0 = inlined_call_operand.vmem [shape: bf16[40,40], index: 0, kind: input, shape index: {}]
  %s1 = inlined_call_operand.vmem [shape: bf16[24,24], index: 1, kind: input, shape index: {}]
  %s2 = inlined_call_operand.vmem [shape: bf16[64,128], index: 2, kind: input, shape index: {}]
  %s3 = inlined_call_operand.hbm [shape: bf16[1280,128], index: 3, kind: input, shape index: {}]
  %s4 = inlined_call_operand.vmem [shape: f32[8,128], index: 4, kind: input, shape index: {}]
  %s5 = inlined_call_operand.vmem [shape: s32[2,128], index: 5, kind: input, shape index: {}]
  %s6 = inlined_call_operand.hbm [shape: f32[16,128], index: 6, kind: output, shape index: {0}]
  %s7 = inlined_call_operand.hbm [shape: f32[24,128], index: 7, kind: output, shape index: {1}]
  %s8 = inlined_call_operand.vmem [shape: f32[1,128], index: 8, kind: output, shape index: {2}]
  %9 = xla_tuple %s6, %s7, %s8
  %s10 = sld [smem:[#allocation0]]
  $region54: #{dual_network_gnn_forward.1} parent=0
    _
  %s12 = ssub.s32 1, %s10
  %s13 = scalar_select 0, %s12, %s10
  $region1: #{dual_network_gnn_forward.1} parent=0
    #allocation2 [shape = 'u8[327680]{0}', space=vmem, size = 0x50000, scoped, tag = 'input window, operand 3, single buffered']
    #allocation3 [shape = 's32[1]{0}', space=sflag, size = 0x4, scoped, tag = 'scoped memory for dual_network_gnn_forward.1']
    #allocation4 [shape = 's32[1]{0}', space=sflag, size = 0x4, scoped, tag = 'scoped memory for dual_network_gnn_forward.1']
    #allocation5 [shape = 'u8[8192]{0}', space=vmem, size = 0x2000, scoped, tag = 'output window, operand 0, single buffered']
    #allocation6 [shape = 'u8[12288]{0}', space=vmem, size = 0x3000, scoped, tag = 'output window, operand 1, single buffered']
    #allocation7 [shape = 's32[1]{0}', space=sflag, size = 0x4, scoped, tag = 'scoped memory for dual_network_gnn_forward.1']
    %14 = vsyncpa [#allocation3], 0
    %15 = vsyncpa [#allocation4], 0
    %16 = vsyncpa [#allocation7], 0
    // Predicated region
    $region2: #{dual_network_gnn_forward.1} parent=1 // pred_check
      _
    $region3: #{dual_network_gnn_forward.1} parent=1 // pred_check_branch
      %18 = sbr.rel (0) target = $region5
    $region4: #{dual_network_gnn_forward.1} parent=1 // pred_region
      _
    $region5: #{dual_network_gnn_forward.1} parent=1 // pred_fallthru
      _
    // Predicated region
    $region6: #{dual_network_gnn_forward.1} parent=1 // pred_check
      _
    $region7: #{dual_network_gnn_forward.1} parent=1 // pred_check_branch
      %20 = sbr.rel (0) target = $region9
    $region8: #{dual_network_gnn_forward.1} parent=1 // pred_region
      _
    $region9: #{dual_network_gnn_forward.1} parent=1 // pred_fallthru
      _
    // Predicated region
    $region10: #{dual_network_gnn_forward.1} parent=1 // pred_check
      _
    $region11: #{dual_network_gnn_forward.1} parent=1 // pred_check_branch
      %22 = sbr.rel (0) target = $region13
    $region12: #{dual_network_gnn_forward.1} parent=1 // pred_region
      _
    $region13: #{dual_network_gnn_forward.1} parent=1 // pred_fallthru
      _
    // Predicated region
    $region14: #{dual_network_gnn_forward.1} parent=1 // pred_check
      _
    $region15: #{dual_network_gnn_forward.1} parent=1 // pred_check_branch
      %24 = sbr.rel (0) target = $region17
    $region16: #{dual_network_gnn_forward.1} parent=1 // pred_region
      %s26 = ssub.s32 10240, 10240
      %27 = vsyncadd [#allocation3], %s26
      %s28 = sshll.u32 [#allocation2], 4
      %s29 = int_to_ptr.vmem [resolvable:$true] %s28
      %34 = dma.hbm_to_vmem [thread:$0]  %s3, 10240, %s29, [#allocation3], 64, 64, 4
    $region17: #{dual_network_gnn_forward.1} parent=1 // pred_fallthru
      _
    // Predicated region
    $region18: #{dual_network_gnn_forward.1} parent=1 // pred_check
      _
    $region19: #{dual_network_gnn_forward.1} parent=1 // pred_check_branch
      %36 = sbr.rel (0) target = $region21
    $region20: #{dual_network_gnn_forward.1} parent=1 // pred_region
      _
    $region21: #{dual_network_gnn_forward.1} parent=1 // pred_fallthru
      _
    // Predicated region
    $region22: #{dual_network_gnn_forward.1} parent=1 // pred_check
      _
    $region23: #{dual_network_gnn_forward.1} parent=1 // pred_check_branch
      %38 = sbr.rel (0) target = $region25
    $region24: #{dual_network_gnn_forward.1} parent=1 // pred_region
      _
    $region25: #{dual_network_gnn_forward.1} parent=1 // pred_fallthru
      _
    // Predicated region
    $region26: #{dual_network_gnn_forward.1} parent=1 // pred_check
      _
    $region27: #{dual_network_gnn_forward.1} parent=1 // pred_check_branch
      %40 = sbr.rel (0) target = $region29
    $region28: #{dual_network_gnn_forward.1} parent=1 // pred_region
      %41 = dma.done [#allocation3], 10240
    $region29: #{dual_network_gnn_forward.1} parent=1 // pred_fallthru
      _
    %v43 = vld [vmem:[%s2] sm:$0xf]
    %v44 = vld [vmem:[%s2 + $0x4] sm:$0xf]
    %v45 = vld [vmem:[%s2 + $0x8] sm:$0xf]
    %v46 = vld [vmem:[%s2 + $0xc] sm:$0xf]
    %v47 = vld [vmem:[%s2 + $0x10] sm:$0xf]
    %v48 = vld [vmem:[%s2 + $0x14] sm:$0xf]
    %v49 = vld [vmem:[%s2 + $0x18] sm:$0xf]
    %v50 = vld [vmem:[%s2 + $0x1c] sm:$0xf]
    %v51 = vld [vmem:[#allocation2] sm:$0xf]
    %v52 = vld [vmem:[#allocation2 + $0x4] sm:$0xf]
    %v53 = vld [vmem:[#allocation2 + $0x8] sm:$0xf]
    %v54 = vld [vmem:[#allocation2 + $0xc] sm:$0xf]
    %v55 = vld [vmem:[#allocation2 + $0x10] sm:$0xf]
    %v56 = vld [vmem:[#allocation2 + $0x14] sm:$0xf]
    %v57 = vld [vmem:[#allocation2 + $0x18] sm:$0xf]
    %v58 = vld [vmem:[#allocation2 + $0x1c] sm:$0xf]
    %v59 = vld [vmem:[#allocation2 + $0x20] sm:$0xf]
    %v60 = vld [vmem:[#allocation2 + $0x24] sm:$0xf]
    %v61 = vld [vmem:[#allocation2 + $0x28] sm:$0xf]
    %v62 = vld [vmem:[#allocation2 + $0x2c] sm:$0xf]
    %v63 = vld [vmem:[#allocation2 + $0x30] sm:$0xf]
    %v64 = vld [vmem:[#allocation2 + $0x34] sm:$0xf]
    %v65 = vld [vmem:[#allocation2 + $0x38] sm:$0xf]
    %v66 = vld [vmem:[#allocation2 + $0x3c] sm:$0xf]
    %v67 = vld [vmem:[%s4] sm:$0x1]
    %v68 = vlaneseq
    %v69 = vshrl.u32 %v68, 7
    %v70 = vsub.s32 0, %v69
    %v71 = vrot.slane %v67, %v70
    %v74 = vunpack.c.l.b16 %v43
    %v75 = vunpack.c.l.b16 %v44
    %v76 = vpack.c.b16 %v75, %v74
    %v94 = vunpack.c.l.b16 %v51
    %v95 = vunpack.c.l.b16 %v52
    %v96 = vunpack.c.l.b16 %v53
    %v97 = vunpack.c.l.b16 %v54
    %v98 = vunpack.c.l.b16 %v55
    %v99 = vunpack.c.l.b16 %v56
    %v100 = vunpack.c.l.b16 %v57
    %v101 = vunpack.c.l.b16 %v58
    %v102 = vunpack.c.l.b16 %v59
    %v103 = vunpack.c.l.b16 %v60
    %v104 = vunpack.c.l.b16 %v61
    %v105 = vunpack.c.l.b16 %v62
    %v106 = vunpack.c.l.b16 %v63
    %v107 = vunpack.c.l.b16 %v64
    %v108 = vunpack.c.l.b16 %v65
    %v109 = vunpack.c.l.b16 %v66
    %v110 = vpack.c.b16 %v95, %v94
    %v111 = vpack.c.b16 %v97, %v96
    %v112 = vpack.c.b16 %v99, %v98
    %v113 = vpack.c.b16 %v101, %v100
    %v114 = vpack.c.b16 %v103, %v102
    %v115 = vpack.c.b16 %v105, %v104
    %v116 = vpack.c.b16 %v107, %v106
    %v117 = vpack.c.b16 %v109, %v108
    %126 = vmatprep.subr.bf16.mxu0 0
    %127 = vmatpush1.bf16.msra.mxu0 %v117
    %128 = vmatprep.subr.bf16.mxu0 0
    %129 = vmatpush1.bf16.msra.mxu0 %v116
    %130 = vmatprep.subr.bf16.mxu0 0
    %131 = vmatpush1.bf16.msra.mxu0 %v115
    %132 = vmatprep.subr.bf16.mxu0 0
    %133 = vmatpush1.bf16.msra.mxu0 %v114
    %134 = vmatprep.subr.bf16.mxu0 0
    %135 = vmatpush1.bf16.msra.mxu0 %v113
    %136 = vmatprep.subr.bf16.mxu0 0
    %137 = vmatpush1.bf16.msra.mxu0 %v112
    %138 = vmatprep.subr.bf16.mxu0 0
    %139 = vmatpush1.bf16.msra.mxu0 %v111
    %140 = vmatprep.subr.bf16.mxu0 0
    %141 = vmatpush1.bf16.msra.mxu0 %v110
    %142 = vmatprep.subr.bf16.mxu0 0
    %143 = vmatpush2.bf16.msra.mxu0 0
    %144 = vmatprep.subr.bf16.mxu0 0
    %145 = vmatpush2.bf16.msra.mxu0 0
    %146 = vmatprep.subr.bf16.mxu0 0
    %147 = vmatpush2.bf16.msra.mxu0 0
    %148 = vmatprep.subr.bf16.mxu0 0
    %149 = vmatpush2.bf16.msra.mxu0 0
    %150 = vmatprep.subr.bf16.mxu0 0
    %151 = vmatpush2.bf16.msra.mxu0 0
    %152 = vmatprep.subr.bf16.mxu0 0
    %153 = vmatpush2.bf16.msra.mxu0 0
    %154 = vmatprep.subr.bf16.mxu0 0
    %155 = vmatpush2.bf16.msra.mxu0 0
    %156 = vmatprep.subr.bf16.mxu0 0
    %157 = vmatpush2.bf16.msra.mxu0 0
    %158 = vmatprep.mubr.bf16.mxu0 0
    %159 = vmatmul.mubr.bf16.gmra.mxu0 %v76
    %v160 = vpop.f32.mrf.mxu0
    %v161 = vadd.f32 %v71, %v160
    %v162 = vpop.f32.mrf.mxu0
    %v163 = vpop.f32.mrf.mxu0
    %v164 = vadd.f32 %v71, %v163
    %v165 = vpop.f32.mrf.mxu0
    %166 = vdwg.mxu0
    %v167 = vld [vmem:[#allocation2 + $0x40] sm:$0xf]
    %v168 = vld [vmem:[#allocation2 + $0x44] sm:$0xf]
    %v169 = vld [vmem:[#allocation2 + $0x48] sm:$0xf]
    %v170 = vld [vmem:[#allocation2 + $0x4c] sm:$0xf]
    %v171 = vld [vmem:[#allocation2 + $0x50] sm:$0xf]
    %v172 = vld [vmem:[#allocation2 + $0x54] sm:$0xf]
    %v173 = vld [vmem:[#allocation2 + $0x58] sm:$0xf]
    %v174 = vld [vmem:[#allocation2 + $0x5c] sm:$0xf]
    %v175 = vld [vmem:[#allocation2 + $0x60] sm:$0xf]
    %v176 = vld [vmem:[#allocation2 + $0x64] sm:$0xf]
    %v177 = vld [vmem:[#allocation2 + $0x68] sm:$0xf]
    %v178 = vld [vmem:[#allocation2 + $0x6c] sm:$0xf]
    %v179 = vld [vmem:[#allocation2 + $0x70] sm:$0xf]
    %v180 = vld [vmem:[#allocation2 + $0x74] sm:$0xf]
    %v181 = vld [vmem:[#allocation2 + $0x78] sm:$0xf]
    %v182 = vld [vmem:[#allocation2 + $0x7c] sm:$0xf]
    %v183 = vld [vmem:[%s4 + $0x1] sm:$0x1]
    %v184 = vlaneseq
    %v185 = vshrl.u32 %v184, 7
    %v186 = vsub.s32 0, %v185
    %v187 = vrot.slane %v183, %v186
    %v191 = vunpack.c.l.b16 %v45
    %v192 = vunpack.c.l.b16 %v46
    %v193 = vunpack.c.l.b16 %v47
    %v194 = vpack.c.b16 %v192, %v191
    %v195 = vpack.c.b16 %v193, %v193
    %v214 = vunpack.c.l.b16 %v167
    %v215 = vunpack.c.l.b16 %v168
    %v216 = vunpack.c.l.b16 %v169
    %v217 = vunpack.c.l.b16 %v170
    %v218 = vunpack.c.l.b16 %v171
    %v219 = vunpack.c.l.b16 %v172
    %v220 = vunpack.c.l.b16 %v173
    %v221 = vunpack.c.l.b16 %v174
    %v222 = vunpack.c.l.b16 %v175
    %v223 = vunpack.c.l.b16 %v176
    %v224 = vunpack.c.l.b16 %v177
    %v225 = vunpack.c.l.b16 %v178
    %v226 = vunpack.c.l.b16 %v179
    %v227 = vunpack.c.l.b16 %v180
    %v228 = vunpack.c.l.b16 %v181
    %v229 = vunpack.c.l.b16 %v182
    %v230 = vpack.c.b16 %v215, %v214
    %v231 = vpack.c.b16 %v217, %v216
    %v232 = vpack.c.b16 %v219, %v218
    %v233 = vpack.c.b16 %v221, %v220
    %v234 = vpack.c.b16 %v223, %v222
    %v235 = vpack.c.b16 %v225, %v224
    %v236 = vpack.c.b16 %v227, %v226
    %v237 = vpack.c.b16 %v229, %v228
    %246 = vmatprep.subr.bf16.mxu0 0
    %247 = vmatpush1.bf16.msra.mxu0 %v237
    %248 = vmatprep.subr.bf16.mxu0 0
    %249 = vmatpush1.bf16.msra.mxu0 %v236
    %250 = vmatprep.subr.bf16.mxu0 0
    %251 = vmatpush1.bf16.msra.mxu0 %v235
    %252 = vmatprep.subr.bf16.mxu0 0
    %253 = vmatpush1.bf16.msra.mxu0 %v234
    %254 = vmatprep.subr.bf16.mxu0 0
    %255 = vmatpush1.bf16.msra.mxu0 %v233
    %256 = vmatprep.subr.bf16.mxu0 0
    %257 = vmatpush1.bf16.msra.mxu0 %v232
    %258 = vmatprep.subr.bf16.mxu0 0
    %259 = vmatpush1.bf16.msra.mxu0 %v231
    %260 = vmatprep.subr.bf16.mxu0 0
    %261 = vmatpush1.bf16.msra.mxu0 %v230
    %262 = vmatprep.subr.bf16.mxu0 0
    %263 = vmatpush2.bf16.msra.mxu0 0
    %264 = vmatprep.subr.bf16.mxu0 0
    %265 = vmatpush2.bf16.msra.mxu0 0
    %266 = vmatprep.subr.bf16.mxu0 0
    %267 = vmatpush2.bf16.msra.mxu0 0
    %268 = vmatprep.subr.bf16.mxu0 0
    %269 = vmatpush2.bf16.msra.mxu0 0
    %270 = vmatprep.subr.bf16.mxu0 0
    %271 = vmatpush2.bf16.msra.mxu0 0
    %272 = vmatprep.subr.bf16.mxu0 0
    %273 = vmatpush2.bf16.msra.mxu0 0
    %274 = vmatprep.subr.bf16.mxu0 0
    %275 = vmatpush2.bf16.msra.mxu0 0
    %276 = vmatprep.subr.bf16.mxu0 0
    %277 = vmatpush2.bf16.msra.mxu0 0
    %278 = vmatprep.mubr.bf16.mxu0 0
    %279 = vmatmul.mubr.bf16.gmra.mxu0 %v194
    %v280 = vpop.f32.mrf.mxu0
    %v281 = vadd.f32 %v187, %v280
    %v282 = vpop.f32.mrf.mxu0
    %v283 = vpop.f32.mrf.mxu0
    %v284 = vadd.f32 %v187, %v283
    %v285 = vpop.f32.mrf.mxu0
    %286 = vmatprep.mubr.bf16.mxu0 0
    %287 = vmatmul.mubr.bf16.gmra.mxu0 %v195
    %v288 = vpop.f32.mrf.mxu0
    %v289 = vadd.f32 %v187, %v288
    %v290 = vpop.f32.mrf.mxu0
    %v291 = vpop.f32.mrf.mxu0
    %v292 = vpop.f32.mrf.mxu0
    %293 = vdwg.mxu0
    %v294 = vld [vmem:[%s0] sm:$0xf]
    %v295 = vld [vmem:[%s0 + $0x4] sm:$0xf]
    %v296 = vld [vmem:[%s0 + $0x8] sm:$0xf]
    %v297 = vld [vmem:[%s0 + $0xc] sm:$0xf]
    %v298 = vld [vmem:[%s0 + $0x10] sm:$0xf]
    %v299 = vpack.c.bf16 %v164, %v161
    %v300 = vpack.c.bf16 %v284, %v281
    %v301 = vpack.c.bf16 %v289, %v289
    %v307 = vunpack.c.l.b16 %v294
    %v308 = vunpack.c.l.b16 %v295
    %v309 = vunpack.c.l.b16 %v296
    %v310 = vunpack.c.l.b16 %v297
    %v311 = vunpack.c.l.b16 %v298
    %v312 = vpack.c.b16 %v308, %v307
    %v313 = vpack.c.b16 %v310, %v309
    %v314 = vpack.c.b16 %v311, %v311
    %vm315 = vcmask 326656
    %v317 = vsel %vm315, %v312, 0
    %v320 = vsel %vm315, %v313, 0
    %v323 = vsel %vm315, %v314, 0
    %vm325 = vcmask 1043456
    %v327 = vsel %vm325, %v301, 0
    %329 = vmatprep.subr.bf16.mxu0 0
    %330 = vmatpush1.bf16.msra.mxu0 0
    %331 = vmatprep.subr.bf16.mxu0 0
    %332 = vmatpush1.bf16.msra.mxu0 0
    %333 = vmatprep.subr.bf16.mxu0 0
    %334 = vmatpush1.bf16.msra.mxu0 0
    %335 = vmatprep.subr.bf16.mxu0 0
    %336 = vmatpush1.bf16.msra.mxu0 0
    %337 = vmatprep.subr.bf16.mxu0 0
    %338 = vmatpush1.bf16.msra.mxu0 0
    %339 = vmatprep.subr.bf16.mxu0 0
    %340 = vmatpush1.bf16.msra.mxu0 %v327
    %341 = vmatprep.subr.bf16.mxu0 0
    %342 = vmatpush1.bf16.msra.mxu0 %v300
    %343 = vmatprep.subr.bf16.mxu0 0
    %344 = vmatpush1.bf16.msra.mxu0 %v299
    %345 = vmatprep.subr.bf16.mxu0 0
    %346 = vmatpush2.bf16.msra.mxu0 0
    %347 = vmatprep.subr.bf16.mxu0 0
    %348 = vmatpush2.bf16.msra.mxu0 0
    %349 = vmatprep.subr.bf16.mxu0 0
    %350 = vmatpush2.bf16.msra.mxu0 0
    %351 = vmatprep.subr.bf16.mxu0 0
    %352 = vmatpush2.bf16.msra.mxu0 0
    %353 = vmatprep.subr.bf16.mxu0 0
    %354 = vmatpush2.bf16.msra.mxu0 0
    %355 = vmatprep.subr.bf16.mxu0 0
    %356 = vmatpush2.bf16.msra.mxu0 0
    %357 = vmatprep.subr.bf16.mxu0 0
    %358 = vmatpush2.bf16.msra.mxu0 0
    %359 = vmatprep.subr.bf16.mxu0 0
    %360 = vmatpush2.bf16.msra.mxu0 0
    %361 = vmatprep.mubr.bf16.mxu0 0
    %362 = vmatmul.mubr.bf16.gmra.mxu0 %v317
    %v363 = vpop.f32.mrf.mxu0
    %v364 = vadd.f32 0.0, %v363
    %v365 = vpop.f32.mrf.mxu0
    %v366 = vpop.f32.mrf.mxu0
    %v367 = vadd.f32 0.0, %v366
    %v368 = vpop.f32.mrf.mxu0
    %369 = vmatprep.mubr.bf16.mxu0 0
    %370 = vmatmul.mubr.bf16.gmra.mxu0 %v320
    %v371 = vpop.f32.mrf.mxu0
    %v372 = vadd.f32 0.0, %v371
    %v373 = vpop.f32.mrf.mxu0
    %v374 = vpop.f32.mrf.mxu0
    %v375 = vadd.f32 0.0, %v374
    %v376 = vpop.f32.mrf.mxu0
    %377 = vmatprep.mubr.bf16.mxu0 0
    %378 = vmatmul.mubr.bf16.gmra.mxu0 %v323
    %v379 = vpop.f32.mrf.mxu0
    %v380 = vadd.f32 0.0, %v379
    %v381 = vpop.f32.mrf.mxu0
    %v382 = vpop.f32.mrf.mxu0
    %v383 = vpop.f32.mrf.mxu0
    %384 = vdwg.mxu0
    %v385 = vadd.f32 %v161, %v364
    %v386 = vadd.f32 %v164, %v367
    %v387 = vadd.f32 %v281, %v372
    %v388 = vadd.f32 %v284, %v375
    %v389 = vadd.f32 %v289, %v380
    %v390 = vpack.c.bf16 %v367, %v364
    %v391 = vpack.c.bf16 %v375, %v372
    %v392 = vpack.c.bf16 %v380, %v380
    %v394 = vsel %vm325, %v392, 0
    %396 = vmatprep.subr.bf16.mxu0 0
    %397 = vmatpush1.bf16.msra.mxu0 0
    %398 = vmatprep.subr.bf16.mxu0 0
    %399 = vmatpush1.bf16.msra.mxu0 0
    %400 = vmatprep.subr.bf16.mxu0 0
    %401 = vmatpush1.bf16.msra.mxu0 0
    %402 = vmatprep.subr.bf16.mxu0 0
    %403 = vmatpush1.bf16.msra.mxu0 0
    %404 = vmatprep.subr.bf16.mxu0 0
    %405 = vmatpush1.bf16.msra.mxu0 0
    %406 = vmatprep.subr.bf16.mxu0 0
    %407 = vmatpush1.bf16.msra.mxu0 %v394
    %408 = vmatprep.subr.bf16.mxu0 0
    %409 = vmatpush1.bf16.msra.mxu0 %v391
    %410 = vmatprep.subr.bf16.mxu0 0
    %411 = vmatpush1.bf16.msra.mxu0 %v390
    %412 = vmatprep.subr.bf16.mxu0 0
    %413 = vmatpush2.bf16.msra.mxu0 0
    %414 = vmatprep.subr.bf16.mxu0 0
    %415 = vmatpush2.bf16.msra.mxu0 0
    %416 = vmatprep.subr.bf16.mxu0 0
    %417 = vmatpush2.bf16.msra.mxu0 0
    %418 = vmatprep.subr.bf16.mxu0 0
    %419 = vmatpush2.bf16.msra.mxu0 0
    %420 = vmatprep.subr.bf16.mxu0 0
    %421 = vmatpush2.bf16.msra.mxu0 0
    %422 = vmatprep.subr.bf16.mxu0 0
    %423 = vmatpush2.bf16.msra.mxu0 0
    %424 = vmatprep.subr.bf16.mxu0 0
    %425 = vmatpush2.bf16.msra.mxu0 0
    %426 = vmatprep.subr.bf16.mxu0 0
    %427 = vmatpush2.bf16.msra.mxu0 0
    %428 = vmatprep.mubr.bf16.mxu0 0
    %429 = vmatmul.mubr.bf16.gmra.mxu0 %v317
    %v430 = vpop.f32.mrf.mxu0
    %v431 = vadd.f32 0.0, %v430
    %v432 = vpop.f32.mrf.mxu0
    %v433 = vpop.f32.mrf.mxu0
    %v434 = vadd.f32 0.0, %v433
    %v435 = vpop.f32.mrf.mxu0
    %436 = vmatprep.mubr.bf16.mxu0 0
    %437 = vmatmul.mubr.bf16.gmra.mxu0 %v320
    %v438 = vpop.f32.mrf.mxu0
    %v439 = vadd.f32 0.0, %v438
    %v440 = vpop.f32.mrf.mxu0
    %v441 = vpop.f32.mrf.mxu0
    %v442 = vadd.f32 0.0, %v441
    %v443 = vpop.f32.mrf.mxu0
    %444 = vmatprep.mubr.bf16.mxu0 0
    %445 = vmatmul.mubr.bf16.gmra.mxu0 %v323
    %v446 = vpop.f32.mrf.mxu0
    %v447 = vadd.f32 0.0, %v446
    %v448 = vpop.f32.mrf.mxu0
    %v449 = vpop.f32.mrf.mxu0
    %v450 = vpop.f32.mrf.mxu0
    %451 = vdwg.mxu0
    %v452 = vadd.f32 %v385, %v431
    %v453 = vadd.f32 %v386, %v434
    %v454 = vadd.f32 %v387, %v439
    %v455 = vadd.f32 %v388, %v442
    %v456 = vadd.f32 %v389, %v447
    %v457 = vmul.f32 %v452, 0.33333334
    %v458 = vmul.f32 %v453, 0.33333334
    %v459 = vmul.f32 %v454, 0.33333334
    %v460 = vmul.f32 %v455, 0.33333334
    %v461 = vmul.f32 %v456, 0.33333334
    %v462 = vld [vmem:[%s1] sm:$0xf]
    %v463 = vld [vmem:[%s1 + $0x4] sm:$0xf]
    %v464 = vld [vmem:[%s1 + $0x8] sm:$0xf]
    %v465 = vld [vmem:[#allocation2 + $0x80] sm:$0xf]
    %v466 = vld [vmem:[#allocation2 + $0x84] sm:$0xf]
    %v467 = vld [vmem:[#allocation2 + $0x88] sm:$0xf]
    %v468 = vld [vmem:[#allocation2 + $0x8c] sm:$0xf]
    %v469 = vld [vmem:[#allocation2 + $0x90] sm:$0xf]
    %v470 = vld [vmem:[#allocation2 + $0x94] sm:$0xf]
    %v471 = vld [vmem:[#allocation2 + $0x98] sm:$0xf]
    %v472 = vld [vmem:[#allocation2 + $0x9c] sm:$0xf]
    %v473 = vld [vmem:[#allocation2 + $0xa0] sm:$0xf]
    %v474 = vld [vmem:[#allocation2 + $0xa4] sm:$0xf]
    %v475 = vld [vmem:[#allocation2 + $0xa8] sm:$0xf]
    %v476 = vld [vmem:[#allocation2 + $0xac] sm:$0xf]
    %v477 = vld [vmem:[#allocation2 + $0xb0] sm:$0xf]
    %v478 = vld [vmem:[#allocation2 + $0xb4] sm:$0xf]
    %v479 = vld [vmem:[#allocation2 + $0xb8] sm:$0xf]
    %v480 = vld [vmem:[#allocation2 + $0xbc] sm:$0xf]
    %v481 = vld [vmem:[%s4 + $0x2] sm:$0x1]
    %v482 = vlaneseq
    %v483 = vshrl.u32 %v482, 7
    %v484 = vsub.s32 0, %v483
    %v485 = vrot.slane %v481, %v484
    %v489 = vunpack.c.l.b16 %v48
    %v490 = vunpack.c.l.b16 %v49
    %v491 = vunpack.c.l.b16 %v50
    %v492 = vpack.c.b16 %v490, %v489
    %v493 = vpack.c.b16 %v491, %v491
    %v512 = vunpack.c.l.b16 %v465
    %v513 = vunpack.c.l.b16 %v466
    %v514 = vunpack.c.l.b16 %v467
    %v515 = vunpack.c.l.b16 %v468
    %v516 = vunpack.c.l.b16 %v469
    %v517 = vunpack.c.l.b16 %v470
    %v518 = vunpack.c.l.b16 %v471
    %v519 = vunpack.c.l.b16 %v472
    %v520 = vunpack.c.l.b16 %v473
    %v521 = vunpack.c.l.b16 %v474
    %v522 = vunpack.c.l.b16 %v475
    %v523 = vunpack.c.l.b16 %v476
    %v524 = vunpack.c.l.b16 %v477
    %v525 = vunpack.c.l.b16 %v478
    %v526 = vunpack.c.l.b16 %v479
    %v527 = vunpack.c.l.b16 %v480
    %v528 = vpack.c.b16 %v513, %v512
    %v529 = vpack.c.b16 %v515, %v514
    %v530 = vpack.c.b16 %v517, %v516
    %v531 = vpack.c.b16 %v519, %v518
    %v532 = vpack.c.b16 %v521, %v520
    %v533 = vpack.c.b16 %v523, %v522
    %v534 = vpack.c.b16 %v525, %v524
    %v535 = vpack.c.b16 %v527, %v526
    %544 = vmatprep.subr.bf16.mxu0 0
    %545 = vmatpush1.bf16.msra.mxu0 %v535
    %546 = vmatprep.subr.bf16.mxu0 0
    %547 = vmatpush1.bf16.msra.mxu0 %v534
    %548 = vmatprep.subr.bf16.mxu0 0
    %549 = vmatpush1.bf16.msra.mxu0 %v533
    %550 = vmatprep.subr.bf16.mxu0 0
    %551 = vmatpush1.bf16.msra.mxu0 %v532
    %552 = vmatprep.subr.bf16.mxu0 0
    %553 = vmatpush1.bf16.msra.mxu0 %v531
    %554 = vmatprep.subr.bf16.mxu0 0
    %555 = vmatpush1.bf16.msra.mxu0 %v530
    %556 = vmatprep.subr.bf16.mxu0 0
    %557 = vmatpush1.bf16.msra.mxu0 %v529
    %558 = vmatprep.subr.bf16.mxu0 0
    %559 = vmatpush1.bf16.msra.mxu0 %v528
    %560 = vmatprep.subr.bf16.mxu0 0
    %561 = vmatpush2.bf16.msra.mxu0 0
    %562 = vmatprep.subr.bf16.mxu0 0
    %563 = vmatpush2.bf16.msra.mxu0 0
    %564 = vmatprep.subr.bf16.mxu0 0
    %565 = vmatpush2.bf16.msra.mxu0 0
    %566 = vmatprep.subr.bf16.mxu0 0
    %567 = vmatpush2.bf16.msra.mxu0 0
    %568 = vmatprep.subr.bf16.mxu0 0
    %569 = vmatpush2.bf16.msra.mxu0 0
    %570 = vmatprep.subr.bf16.mxu0 0
    %571 = vmatpush2.bf16.msra.mxu0 0
    %572 = vmatprep.subr.bf16.mxu0 0
    %573 = vmatpush2.bf16.msra.mxu0 0
    %574 = vmatprep.subr.bf16.mxu0 0
    %575 = vmatpush2.bf16.msra.mxu0 0
    %576 = vmatprep.mubr.bf16.mxu0 0
    %577 = vmatmul.mubr.bf16.gmra.mxu0 %v492
    %v578 = vpop.f32.mrf.mxu0
    %v579 = vadd.f32 %v485, %v578
    %v580 = vpop.f32.mrf.mxu0
    %v581 = vpop.f32.mrf.mxu0
    %v582 = vadd.f32 %v485, %v581
    %v583 = vpop.f32.mrf.mxu0
    %584 = vmatprep.mubr.bf16.mxu0 0
    %585 = vmatmul.mubr.bf16.gmra.mxu0 %v493
    %v586 = vpop.f32.mrf.mxu0
    %v587 = vadd.f32 %v485, %v586
    %v588 = vpop.f32.mrf.mxu0
    %v589 = vpop.f32.mrf.mxu0
    %v590 = vpop.f32.mrf.mxu0
    %591 = vdwg.mxu0
    %v592 = vpack.c.bf16 %v582, %v579
    %v593 = vpack.c.bf16 %v587, %v587
    %v597 = vunpack.c.l.b16 %v462
    %v598 = vunpack.c.l.b16 %v463
    %v599 = vunpack.c.l.b16 %v464
    %v600 = vpack.c.b16 %v598, %v597
    %v601 = vpack.c.b16 %v599, %v599
    %vm602 = vcmask 195584
    %v604 = vsel %vm602, %v600, 0
    %v607 = vsel %vm602, %v601, 0
    %v610 = vsel %vm325, %v593, 0
    %612 = vmatprep.subr.bf16.mxu0 0
    %613 = vmatpush1.bf16.msra.mxu0 0
    %614 = vmatprep.subr.bf16.mxu0 0
    %615 = vmatpush1.bf16.msra.mxu0 0
    %616 = vmatprep.subr.bf16.mxu0 0
    %617 = vmatpush1.bf16.msra.mxu0 0
    %618 = vmatprep.subr.bf16.mxu0 0
    %619 = vmatpush1.bf16.msra.mxu0 0
    %620 = vmatprep.subr.bf16.mxu0 0
    %621 = vmatpush1.bf16.msra.mxu0 0
    %622 = vmatprep.subr.bf16.mxu0 0
    %623 = vmatpush1.bf16.msra.mxu0 0
    %624 = vmatprep.subr.bf16.mxu0 0
    %625 = vmatpush1.bf16.msra.mxu0 %v610
    %626 = vmatprep.subr.bf16.mxu0 0
    %627 = vmatpush1.bf16.msra.mxu0 %v592
    %628 = vmatprep.subr.bf16.mxu0 0
    %629 = vmatpush2.bf16.msra.mxu0 0
    %630 = vmatprep.subr.bf16.mxu0 0
    %631 = vmatpush2.bf16.msra.mxu0 0
    %632 = vmatprep.subr.bf16.mxu0 0
    %633 = vmatpush2.bf16.msra.mxu0 0
    %634 = vmatprep.subr.bf16.mxu0 0
    %635 = vmatpush2.bf16.msra.mxu0 0
    %636 = vmatprep.subr.bf16.mxu0 0
    %637 = vmatpush2.bf16.msra.mxu0 0
    %638 = vmatprep.subr.bf16.mxu0 0
    %639 = vmatpush2.bf16.msra.mxu0 0
    %640 = vmatprep.subr.bf16.mxu0 0
    %641 = vmatpush2.bf16.msra.mxu0 0
    %642 = vmatprep.subr.bf16.mxu0 0
    %643 = vmatpush2.bf16.msra.mxu0 0
    %644 = vmatprep.mubr.bf16.mxu0 0
    %645 = vmatmul.mubr.bf16.gmra.mxu0 %v604
    %v646 = vpop.f32.mrf.mxu0
    %v647 = vadd.f32 0.0, %v646
    %v648 = vpop.f32.mrf.mxu0
    %v649 = vpop.f32.mrf.mxu0
    %v650 = vadd.f32 0.0, %v649
    %v651 = vpop.f32.mrf.mxu0
    %652 = vmatprep.mubr.bf16.mxu0 0
    %653 = vmatmul.mubr.bf16.gmra.mxu0 %v607
    %v654 = vpop.f32.mrf.mxu0
    %v655 = vadd.f32 0.0, %v654
    %v656 = vpop.f32.mrf.mxu0
    %v657 = vpop.f32.mrf.mxu0
    %v658 = vpop.f32.mrf.mxu0
    %659 = vdwg.mxu0
    %v660 = vpack.c.bf16 %v650, %v647
    %v661 = vpack.c.bf16 %v655, %v655
    %v662 = vld [vmem:[#allocation2 + $0xc0] sm:$0xf]
    %v663 = vld [vmem:[#allocation2 + $0xc4] sm:$0xf]
    %v664 = vld [vmem:[#allocation2 + $0xc8] sm:$0xf]
    %v665 = vld [vmem:[#allocation2 + $0xcc] sm:$0xf]
    %v666 = vld [vmem:[#allocation2 + $0xd0] sm:$0xf]
    %v667 = vld [vmem:[#allocation2 + $0xd4] sm:$0xf]
    %v668 = vld [vmem:[#allocation2 + $0xd8] sm:$0xf]
    %v669 = vld [vmem:[#allocation2 + $0xdc] sm:$0xf]
    %v670 = vld [vmem:[#allocation2 + $0xe0] sm:$0xf]
    %v671 = vld [vmem:[#allocation2 + $0xe4] sm:$0xf]
    %v672 = vld [vmem:[#allocation2 + $0xe8] sm:$0xf]
    %v673 = vld [vmem:[#allocation2 + $0xec] sm:$0xf]
    %v674 = vld [vmem:[#allocation2 + $0xf0] sm:$0xf]
    %v675 = vld [vmem:[#allocation2 + $0xf4] sm:$0xf]
    %v676 = vld [vmem:[#allocation2 + $0xf8] sm:$0xf]
    %v677 = vld [vmem:[#allocation2 + $0xfc] sm:$0xf]
    %v678 = vld [vmem:[%s4 + $0x3] sm:$0x1]
    %v679 = vlaneseq
    %v680 = vshrl.u32 %v679, 7
    %v681 = vsub.s32 0, %v680
    %v682 = vrot.slane %v678, %v681
    %v699 = vunpack.c.l.b16 %v662
    %v700 = vunpack.c.l.b16 %v663
    %v701 = vunpack.c.l.b16 %v664
    %v702 = vunpack.c.l.b16 %v665
    %v703 = vunpack.c.l.b16 %v666
    %v704 = vunpack.c.l.b16 %v667
    %v705 = vunpack.c.l.b16 %v668
    %v706 = vunpack.c.l.b16 %v669
    %v707 = vunpack.c.l.b16 %v670
    %v708 = vunpack.c.l.b16 %v671
    %v709 = vunpack.c.l.b16 %v672
    %v710 = vunpack.c.l.b16 %v673
    %v711 = vunpack.c.l.b16 %v674
    %v712 = vunpack.c.l.b16 %v675
    %v713 = vunpack.c.l.b16 %v676
    %v714 = vunpack.c.l.b16 %v677
    %v715 = vpack.c.b16 %v700, %v699
    %v716 = vpack.c.b16 %v702, %v701
    %v717 = vpack.c.b16 %v704, %v703
    %v718 = vpack.c.b16 %v706, %v705
    %v719 = vpack.c.b16 %v708, %v707
    %v720 = vpack.c.b16 %v710, %v709
    %v721 = vpack.c.b16 %v712, %v711
    %v722 = vpack.c.b16 %v714, %v713
    %731 = vmatprep.subr.bf16.mxu0 0
    %732 = vmatpush1.bf16.msra.mxu0 %v722
    %733 = vmatprep.subr.bf16.mxu0 0
    %734 = vmatpush1.bf16.msra.mxu0 %v721
    %735 = vmatprep.subr.bf16.mxu0 0
    %736 = vmatpush1.bf16.msra.mxu0 %v720
    %737 = vmatprep.subr.bf16.mxu0 0
    %738 = vmatpush1.bf16.msra.mxu0 %v719
    %739 = vmatprep.subr.bf16.mxu0 0
    %740 = vmatpush1.bf16.msra.mxu0 %v718
    %741 = vmatprep.subr.bf16.mxu0 0
    %742 = vmatpush1.bf16.msra.mxu0 %v717
    %743 = vmatprep.subr.bf16.mxu0 0
    %744 = vmatpush1.bf16.msra.mxu0 %v716
    %745 = vmatprep.subr.bf16.mxu0 0
    %746 = vmatpush1.bf16.msra.mxu0 %v715
    %747 = vmatprep.subr.bf16.mxu0 0
    %748 = vmatpush2.bf16.msra.mxu0 0
    %749 = vmatprep.subr.bf16.mxu0 0
    %750 = vmatpush2.bf16.msra.mxu0 0
    %751 = vmatprep.subr.bf16.mxu0 0
    %752 = vmatpush2.bf16.msra.mxu0 0
    %753 = vmatprep.subr.bf16.mxu0 0
    %754 = vmatpush2.bf16.msra.mxu0 0
    %755 = vmatprep.subr.bf16.mxu0 0
    %756 = vmatpush2.bf16.msra.mxu0 0
    %757 = vmatprep.subr.bf16.mxu0 0
    %758 = vmatpush2.bf16.msra.mxu0 0
    %759 = vmatprep.subr.bf16.mxu0 0
    %760 = vmatpush2.bf16.msra.mxu0 0
    %761 = vmatprep.subr.bf16.mxu0 0
    %762 = vmatpush2.bf16.msra.mxu0 0
    %763 = vmatprep.mubr.bf16.mxu0 0
    %764 = vmatmul.mubr.bf16.gmra.mxu0 %v660
    %v765 = vpop.f32.mrf.mxu0
    %v766 = vadd.f32 %v682, %v765
    %v767 = vpop.f32.mrf.mxu0
    %v768 = vpop.f32.mrf.mxu0
    %v769 = vadd.f32 %v682, %v768
    %v770 = vpop.f32.mrf.mxu0
    %771 = vmatprep.mubr.bf16.mxu0 0
    %772 = vmatmul.mubr.bf16.gmra.mxu0 %v661
    %v773 = vpop.f32.mrf.mxu0
    %v774 = vadd.f32 %v682, %v773
    %v775 = vpop.f32.mrf.mxu0
    %v776 = vpop.f32.mrf.mxu0
    %v777 = vpop.f32.mrf.mxu0
    %778 = vdwg.mxu0
    %v779 = vld [vmem:[#allocation2 + $0x100] sm:$0xf]
    %v780 = vld [vmem:[#allocation2 + $0x104] sm:$0xf]
    %v781 = vld [vmem:[#allocation2 + $0x108] sm:$0xf]
    %v782 = vld [vmem:[#allocation2 + $0x10c] sm:$0xf]
    %v783 = vld [vmem:[#allocation2 + $0x110] sm:$0xf]
    %v784 = vld [vmem:[#allocation2 + $0x114] sm:$0xf]
    %v785 = vld [vmem:[#allocation2 + $0x118] sm:$0xf]
    %v786 = vld [vmem:[#allocation2 + $0x11c] sm:$0xf]
    %v787 = vld [vmem:[#allocation2 + $0x120] sm:$0xf]
    %v788 = vld [vmem:[#allocation2 + $0x124] sm:$0xf]
    %v789 = vld [vmem:[#allocation2 + $0x128] sm:$0xf]
    %v790 = vld [vmem:[#allocation2 + $0x12c] sm:$0xf]
    %v791 = vld [vmem:[#allocation2 + $0x130] sm:$0xf]
    %v792 = vld [vmem:[#allocation2 + $0x134] sm:$0xf]
    %v793 = vld [vmem:[#allocation2 + $0x138] sm:$0xf]
    %v794 = vld [vmem:[#allocation2 + $0x13c] sm:$0xf]
    %v811 = vunpack.c.l.b16 %v779
    %v812 = vunpack.c.l.b16 %v780
    %v813 = vunpack.c.l.b16 %v781
    %v814 = vunpack.c.l.b16 %v782
    %v815 = vunpack.c.l.b16 %v783
    %v816 = vunpack.c.l.b16 %v784
    %v817 = vunpack.c.l.b16 %v785
    %v818 = vunpack.c.l.b16 %v786
    %v819 = vunpack.c.l.b16 %v787
    %v820 = vunpack.c.l.b16 %v788
    %v821 = vunpack.c.l.b16 %v789
    %v822 = vunpack.c.l.b16 %v790
    %v823 = vunpack.c.l.b16 %v791
    %v824 = vunpack.c.l.b16 %v792
    %v825 = vunpack.c.l.b16 %v793
    %v826 = vunpack.c.l.b16 %v794
    %v827 = vpack.c.b16 %v812, %v811
    %v828 = vpack.c.b16 %v814, %v813
    %v829 = vpack.c.b16 %v816, %v815
    %v830 = vpack.c.b16 %v818, %v817
    %v831 = vpack.c.b16 %v820, %v819
    %v832 = vpack.c.b16 %v822, %v821
    %v833 = vpack.c.b16 %v824, %v823
    %v834 = vpack.c.b16 %v826, %v825
    %843 = vmatprep.subr.bf16.mxu0 0
    %844 = vmatpush1.bf16.msra.mxu0 %v834
    %845 = vmatprep.subr.bf16.mxu0 0
    %846 = vmatpush1.bf16.msra.mxu0 %v833
    %847 = vmatprep.subr.bf16.mxu0 0
    %848 = vmatpush1.bf16.msra.mxu0 %v832
    %849 = vmatprep.subr.bf16.mxu0 0
    %850 = vmatpush1.bf16.msra.mxu0 %v831
    %851 = vmatprep.subr.bf16.mxu0 0
    %852 = vmatpush1.bf16.msra.mxu0 %v830
    %853 = vmatprep.subr.bf16.mxu0 0
    %854 = vmatpush1.bf16.msra.mxu0 %v829
    %855 = vmatprep.subr.bf16.mxu0 0
    %856 = vmatpush1.bf16.msra.mxu0 %v828
    %857 = vmatprep.subr.bf16.mxu0 0
    %858 = vmatpush1.bf16.msra.mxu0 %v827
    %859 = vmatprep.subr.bf16.mxu0 0
    %860 = vmatpush2.bf16.msra.mxu0 0
    %861 = vmatprep.subr.bf16.mxu0 0
    %862 = vmatpush2.bf16.msra.mxu0 0
    %863 = vmatprep.subr.bf16.mxu0 0
    %864 = vmatpush2.bf16.msra.mxu0 0
    %865 = vmatprep.subr.bf16.mxu0 0
    %866 = vmatpush2.bf16.msra.mxu0 0
    %867 = vmatprep.subr.bf16.mxu0 0
    %868 = vmatpush2.bf16.msra.mxu0 0
    %869 = vmatprep.subr.bf16.mxu0 0
    %870 = vmatpush2.bf16.msra.mxu0 0
    %871 = vmatprep.subr.bf16.mxu0 0
    %872 = vmatpush2.bf16.msra.mxu0 0
    %873 = vmatprep.subr.bf16.mxu0 0
    %874 = vmatpush2.bf16.msra.mxu0 0
    %875 = vmatprep.mubr.bf16.mxu0 0
    %876 = vmatmul.mubr.bf16.gmra.mxu0 %v592
    %v877 = vpop.f32.mrf.mxu0
    %v878 = vadd.f32 0.0, %v877
    %v879 = vpop.f32.mrf.mxu0
    %v880 = vpop.f32.mrf.mxu0
    %v881 = vadd.f32 0.0, %v880
    %v882 = vpop.f32.mrf.mxu0
    %883 = vmatprep.mubr.bf16.mxu0 0
    %884 = vmatmul.mubr.bf16.gmra.mxu0 %v593
    %v885 = vpop.f32.mrf.mxu0
    %v886 = vadd.f32 0.0, %v885
    %v887 = vpop.f32.mrf.mxu0
    %v888 = vpop.f32.mrf.mxu0
    %v889 = vpop.f32.mrf.mxu0
    %890 = vdwg.mxu0
    %v891 = vadd.f32 %v766, %v878
    %v892 = vadd.f32 %v769, %v881
    %v893 = vadd.f32 %v774, %v886
    %v894 = vmax.f32 %v891, 0.0
    %v895 = vmax.f32 %v892, 0.0
    %v896 = vmax.f32 %v893, 0.0
    %v897 = vpack.c.bf16 %v895, %v894
    %v898 = vpack.c.bf16 %v896, %v896
    %v900 = vsel %vm325, %v898, 0
    %902 = vmatprep.subr.bf16.mxu0 0
    %903 = vmatpush1.bf16.msra.mxu0 0
    %904 = vmatprep.subr.bf16.mxu0 0
    %905 = vmatpush1.bf16.msra.mxu0 0
    %906 = vmatprep.subr.bf16.mxu0 0
    %907 = vmatpush1.bf16.msra.mxu0 0
    %908 = vmatprep.subr.bf16.mxu0 0
    %909 = vmatpush1.bf16.msra.mxu0 0
    %910 = vmatprep.subr.bf16.mxu0 0
    %911 = vmatpush1.bf16.msra.mxu0 0
    %912 = vmatprep.subr.bf16.mxu0 0
    %913 = vmatpush1.bf16.msra.mxu0 0
    %914 = vmatprep.subr.bf16.mxu0 0
    %915 = vmatpush1.bf16.msra.mxu0 %v900
    %916 = vmatprep.subr.bf16.mxu0 0
    %917 = vmatpush1.bf16.msra.mxu0 %v897
    %918 = vmatprep.subr.bf16.mxu0 0
    %919 = vmatpush2.bf16.msra.mxu0 0
    %920 = vmatprep.subr.bf16.mxu0 0
    %921 = vmatpush2.bf16.msra.mxu0 0
    %922 = vmatprep.subr.bf16.mxu0 0
    %923 = vmatpush2.bf16.msra.mxu0 0
    %924 = vmatprep.subr.bf16.mxu0 0
    %925 = vmatpush2.bf16.msra.mxu0 0
    %926 = vmatprep.subr.bf16.mxu0 0
    %927 = vmatpush2.bf16.msra.mxu0 0
    %928 = vmatprep.subr.bf16.mxu0 0
    %929 = vmatpush2.bf16.msra.mxu0 0
    %930 = vmatprep.subr.bf16.mxu0 0
    %931 = vmatpush2.bf16.msra.mxu0 0
    %932 = vmatprep.subr.bf16.mxu0 0
    %933 = vmatpush2.bf16.msra.mxu0 0
    %934 = vmatprep.mubr.bf16.mxu0 0
    %935 = vmatmul.mubr.bf16.gmra.mxu0 %v604
    %v936 = vpop.f32.mrf.mxu0
    %v937 = vadd.f32 0.0, %v936
    %v938 = vpop.f32.mrf.mxu0
    %v939 = vpop.f32.mrf.mxu0
    %v940 = vadd.f32 0.0, %v939
    %v941 = vpop.f32.mrf.mxu0
    %942 = vmatprep.mubr.bf16.mxu0 0
    %943 = vmatmul.mubr.bf16.gmra.mxu0 %v607
    %v944 = vpop.f32.mrf.mxu0
    %v945 = vadd.f32 0.0, %v944
    %v946 = vpop.f32.mrf.mxu0
    %v947 = vpop.f32.mrf.mxu0
    %v948 = vpop.f32.mrf.mxu0
    %949 = vdwg.mxu0
    %v950 = vpack.c.bf16 %v940, %v937
    %v951 = vpack.c.bf16 %v945, %v945
    %v952 = vld [vmem:[#allocation2 + $0x140] sm:$0xf]
    %v953 = vld [vmem:[#allocation2 + $0x144] sm:$0xf]
    %v954 = vld [vmem:[#allocation2 + $0x148] sm:$0xf]
    %v955 = vld [vmem:[#allocation2 + $0x14c] sm:$0xf]
    %v956 = vld [vmem:[#allocation2 + $0x150] sm:$0xf]
    %v957 = vld [vmem:[#allocation2 + $0x154] sm:$0xf]
    %v958 = vld [vmem:[#allocation2 + $0x158] sm:$0xf]
    %v959 = vld [vmem:[#allocation2 + $0x15c] sm:$0xf]
    %v960 = vld [vmem:[#allocation2 + $0x160] sm:$0xf]
    %v961 = vld [vmem:[#allocation2 + $0x164] sm:$0xf]
    %v962 = vld [vmem:[#allocation2 + $0x168] sm:$0xf]
    %v963 = vld [vmem:[#allocation2 + $0x16c] sm:$0xf]
    %v964 = vld [vmem:[#allocation2 + $0x170] sm:$0xf]
    %v965 = vld [vmem:[#allocation2 + $0x174] sm:$0xf]
    %v966 = vld [vmem:[#allocation2 + $0x178] sm:$0xf]
    %v967 = vld [vmem:[#allocation2 + $0x17c] sm:$0xf]
    %v968 = vld [vmem:[%s4 + $0x4] sm:$0x1]
    %v969 = vlaneseq
    %v970 = vshrl.u32 %v969, 7
    %v971 = vsub.s32 0, %v970
    %v972 = vrot.slane %v968, %v971
    %v989 = vunpack.c.l.b16 %v952
    %v990 = vunpack.c.l.b16 %v953
    %v991 = vunpack.c.l.b16 %v954
    %v992 = vunpack.c.l.b16 %v955
    %v993 = vunpack.c.l.b16 %v956
    %v994 = vunpack.c.l.b16 %v957
    %v995 = vunpack.c.l.b16 %v958
    %v996 = vunpack.c.l.b16 %v959
    %v997 = vunpack.c.l.b16 %v960
    %v998 = vunpack.c.l.b16 %v961
    %v999 = vunpack.c.l.b16 %v962
    %v1000 = vunpack.c.l.b16 %v963
    %v1001 = vunpack.c.l.b16 %v964
    %v1002 = vunpack.c.l.b16 %v965
    %v1003 = vunpack.c.l.b16 %v966
    %v1004 = vunpack.c.l.b16 %v967
    %v1005 = vpack.c.b16 %v990, %v989
    %v1006 = vpack.c.b16 %v992, %v991
    %v1007 = vpack.c.b16 %v994, %v993
    %v1008 = vpack.c.b16 %v996, %v995
    %v1009 = vpack.c.b16 %v998, %v997
    %v1010 = vpack.c.b16 %v1000, %v999
    %v1011 = vpack.c.b16 %v1002, %v1001
    %v1012 = vpack.c.b16 %v1004, %v1003
    %1021 = vmatprep.subr.bf16.mxu0 0
    %1022 = vmatpush1.bf16.msra.mxu0 %v1012
    %1023 = vmatprep.subr.bf16.mxu0 0
    %1024 = vmatpush1.bf16.msra.mxu0 %v1011
    %1025 = vmatprep.subr.bf16.mxu0 0
    %1026 = vmatpush1.bf16.msra.mxu0 %v1010
    %1027 = vmatprep.subr.bf16.mxu0 0
    %1028 = vmatpush1.bf16.msra.mxu0 %v1009
    %1029 = vmatprep.subr.bf16.mxu0 0
    %1030 = vmatpush1.bf16.msra.mxu0 %v1008
    %1031 = vmatprep.subr.bf16.mxu0 0
    %1032 = vmatpush1.bf16.msra.mxu0 %v1007
    %1033 = vmatprep.subr.bf16.mxu0 0
    %1034 = vmatpush1.bf16.msra.mxu0 %v1006
    %1035 = vmatprep.subr.bf16.mxu0 0
    %1036 = vmatpush1.bf16.msra.mxu0 %v1005
    %1037 = vmatprep.subr.bf16.mxu0 0
    %1038 = vmatpush2.bf16.msra.mxu0 0
    %1039 = vmatprep.subr.bf16.mxu0 0
    %1040 = vmatpush2.bf16.msra.mxu0 0
    %1041 = vmatprep.subr.bf16.mxu0 0
    %1042 = vmatpush2.bf16.msra.mxu0 0
    %1043 = vmatprep.subr.bf16.mxu0 0
    %1044 = vmatpush2.bf16.msra.mxu0 0
    %1045 = vmatprep.subr.bf16.mxu0 0
    %1046 = vmatpush2.bf16.msra.mxu0 0
    %1047 = vmatprep.subr.bf16.mxu0 0
    %1048 = vmatpush2.bf16.msra.mxu0 0
    %1049 = vmatprep.subr.bf16.mxu0 0
    %1050 = vmatpush2.bf16.msra.mxu0 0
    %1051 = vmatprep.subr.bf16.mxu0 0
    %1052 = vmatpush2.bf16.msra.mxu0 0
    %1053 = vmatprep.mubr.bf16.mxu0 0
    %1054 = vmatmul.mubr.bf16.gmra.mxu0 %v950
    %v1055 = vpop.f32.mrf.mxu0
    %v1056 = vadd.f32 %v972, %v1055
    %v1057 = vpop.f32.mrf.mxu0
    %v1058 = vpop.f32.mrf.mxu0
    %v1059 = vadd.f32 %v972, %v1058
    %v1060 = vpop.f32.mrf.mxu0
    %1061 = vmatprep.mubr.bf16.mxu0 0
    %1062 = vmatmul.mubr.bf16.gmra.mxu0 %v951
    %v1063 = vpop.f32.mrf.mxu0
    %v1064 = vadd.f32 %v972, %v1063
    %v1065 = vpop.f32.mrf.mxu0
    %v1066 = vpop.f32.mrf.mxu0
    %v1067 = vpop.f32.mrf.mxu0
    %1068 = vdwg.mxu0
    %v1069 = vld [vmem:[#allocation2 + $0x180] sm:$0xf]
    %v1070 = vld [vmem:[#allocation2 + $0x184] sm:$0xf]
    %v1071 = vld [vmem:[#allocation2 + $0x188] sm:$0xf]
    %v1072 = vld [vmem:[#allocation2 + $0x18c] sm:$0xf]
    %v1073 = vld [vmem:[#allocation2 + $0x190] sm:$0xf]
    %v1074 = vld [vmem:[#allocation2 + $0x194] sm:$0xf]
    %v1075 = vld [vmem:[#allocation2 + $0x198] sm:$0xf]
    %v1076 = vld [vmem:[#allocation2 + $0x19c] sm:$0xf]
    %v1077 = vld [vmem:[#allocation2 + $0x1a0] sm:$0xf]
    %v1078 = vld [vmem:[#allocation2 + $0x1a4] sm:$0xf]
    %v1079 = vld [vmem:[#allocation2 + $0x1a8] sm:$0xf]
    %v1080 = vld [vmem:[#allocation2 + $0x1ac] sm:$0xf]
    %v1081 = vld [vmem:[#allocation2 + $0x1b0] sm:$0xf]
    %v1082 = vld [vmem:[#allocation2 + $0x1b4] sm:$0xf]
    %v1083 = vld [vmem:[#allocation2 + $0x1b8] sm:$0xf]
    %v1084 = vld [vmem:[#allocation2 + $0x1bc] sm:$0xf]
    %v1101 = vunpack.c.l.b16 %v1069
    %v1102 = vunpack.c.l.b16 %v1070
    %v1103 = vunpack.c.l.b16 %v1071
    %v1104 = vunpack.c.l.b16 %v1072
    %v1105 = vunpack.c.l.b16 %v1073
    %v1106 = vunpack.c.l.b16 %v1074
    %v1107 = vunpack.c.l.b16 %v1075
    %v1108 = vunpack.c.l.b16 %v1076
    %v1109 = vunpack.c.l.b16 %v1077
    %v1110 = vunpack.c.l.b16 %v1078
    %v1111 = vunpack.c.l.b16 %v1079
    %v1112 = vunpack.c.l.b16 %v1080
    %v1113 = vunpack.c.l.b16 %v1081
    %v1114 = vunpack.c.l.b16 %v1082
    %v1115 = vunpack.c.l.b16 %v1083
    %v1116 = vunpack.c.l.b16 %v1084
    %v1117 = vpack.c.b16 %v1102, %v1101
    %v1118 = vpack.c.b16 %v1104, %v1103
    %v1119 = vpack.c.b16 %v1106, %v1105
    %v1120 = vpack.c.b16 %v1108, %v1107
    %v1121 = vpack.c.b16 %v1110, %v1109
    %v1122 = vpack.c.b16 %v1112, %v1111
    %v1123 = vpack.c.b16 %v1114, %v1113
    %v1124 = vpack.c.b16 %v1116, %v1115
    %1133 = vmatprep.subr.bf16.mxu0 0
    %1134 = vmatpush1.bf16.msra.mxu0 %v1124
    %1135 = vmatprep.subr.bf16.mxu0 0
    %1136 = vmatpush1.bf16.msra.mxu0 %v1123
    %1137 = vmatprep.subr.bf16.mxu0 0
    %1138 = vmatpush1.bf16.msra.mxu0 %v1122
    %1139 = vmatprep.subr.bf16.mxu0 0
    %1140 = vmatpush1.bf16.msra.mxu0 %v1121
    %1141 = vmatprep.subr.bf16.mxu0 0
    %1142 = vmatpush1.bf16.msra.mxu0 %v1120
    %1143 = vmatprep.subr.bf16.mxu0 0
    %1144 = vmatpush1.bf16.msra.mxu0 %v1119
    %1145 = vmatprep.subr.bf16.mxu0 0
    %1146 = vmatpush1.bf16.msra.mxu0 %v1118
    %1147 = vmatprep.subr.bf16.mxu0 0
    %1148 = vmatpush1.bf16.msra.mxu0 %v1117
    %1149 = vmatprep.subr.bf16.mxu0 0
    %1150 = vmatpush2.bf16.msra.mxu0 0
    %1151 = vmatprep.subr.bf16.mxu0 0
    %1152 = vmatpush2.bf16.msra.mxu0 0
    %1153 = vmatprep.subr.bf16.mxu0 0
    %1154 = vmatpush2.bf16.msra.mxu0 0
    %1155 = vmatprep.subr.bf16.mxu0 0
    %1156 = vmatpush2.bf16.msra.mxu0 0
    %1157 = vmatprep.subr.bf16.mxu0 0
    %1158 = vmatpush2.bf16.msra.mxu0 0
    %1159 = vmatprep.subr.bf16.mxu0 0
    %1160 = vmatpush2.bf16.msra.mxu0 0
    %1161 = vmatprep.subr.bf16.mxu0 0
    %1162 = vmatpush2.bf16.msra.mxu0 0
    %1163 = vmatprep.subr.bf16.mxu0 0
    %1164 = vmatpush2.bf16.msra.mxu0 0
    %1165 = vmatprep.mubr.bf16.mxu0 0
    %1166 = vmatmul.mubr.bf16.gmra.mxu0 %v897
    %v1167 = vpop.f32.mrf.mxu0
    %v1168 = vadd.f32 0.0, %v1167
    %v1169 = vpop.f32.mrf.mxu0
    %v1170 = vpop.f32.mrf.mxu0
    %v1171 = vadd.f32 0.0, %v1170
    %v1172 = vpop.f32.mrf.mxu0
    %1173 = vmatprep.mubr.bf16.mxu0 0
    %1174 = vmatmul.mubr.bf16.gmra.mxu0 %v898
    %v1175 = vpop.f32.mrf.mxu0
    %v1176 = vadd.f32 0.0, %v1175
    %v1177 = vpop.f32.mrf.mxu0
    %v1178 = vpop.f32.mrf.mxu0
    %v1179 = vpop.f32.mrf.mxu0
    %1180 = vdwg.mxu0
    %v1181 = vadd.f32 %v1056, %v1168
    %v1182 = vadd.f32 %v1059, %v1171
    %v1183 = vadd.f32 %v1064, %v1176
    %v1184 = vmax.f32 %v1181, 0.0
    %v1185 = vmax.f32 %v1182, 0.0
    %v1186 = vmax.f32 %v1183, 0.0
    %v1187 = vpack.c.bf16 %v460, %v459
    %v1188 = vpack.c.bf16 %v461, %v461
    %v1189 = vld [vmem:[#allocation2 + $0x1c0] sm:$0xf]
    %v1190 = vld [vmem:[#allocation2 + $0x1c4] sm:$0xf]
    %v1191 = vld [vmem:[#allocation2 + $0x1c8] sm:$0xf]
    %v1192 = vld [vmem:[#allocation2 + $0x1cc] sm:$0xf]
    %v1193 = vld [vmem:[#allocation2 + $0x1d0] sm:$0xf]
    %v1194 = vld [vmem:[#allocation2 + $0x1d4] sm:$0xf]
    %v1195 = vld [vmem:[#allocation2 + $0x1d8] sm:$0xf]
    %v1196 = vld [vmem:[#allocation2 + $0x1dc] sm:$0xf]
    %v1197 = vld [vmem:[#allocation2 + $0x1e0] sm:$0xf]
    %v1198 = vld [vmem:[#allocation2 + $0x1e4] sm:$0xf]
    %v1199 = vld [vmem:[#allocation2 + $0x1e8] sm:$0xf]
    %v1200 = vld [vmem:[#allocation2 + $0x1ec] sm:$0xf]
    %v1201 = vld [vmem:[#allocation2 + $0x1f0] sm:$0xf]
    %v1202 = vld [vmem:[#allocation2 + $0x1f4] sm:$0xf]
    %v1203 = vld [vmem:[#allocation2 + $0x1f8] sm:$0xf]
    %v1204 = vld [vmem:[#allocation2 + $0x1fc] sm:$0xf]
    %v1205 = vpack.c.bf16 %v1185, %v1184
    %v1206 = vpack.c.bf16 %v1186, %v1186
    %v1207 = vld [vmem:[#allocation2 + $0x200] sm:$0xf]
    %v1208 = vld [vmem:[#allocation2 + $0x204] sm:$0xf]
    %v1209 = vld [vmem:[#allocation2 + $0x208] sm:$0xf]
    %v1210 = vld [vmem:[#allocation2 + $0x20c] sm:$0xf]
    %v1211 = vld [vmem:[#allocation2 + $0x210] sm:$0xf]
    %v1212 = vld [vmem:[#allocation2 + $0x214] sm:$0xf]
    %v1213 = vld [vmem:[#allocation2 + $0x218] sm:$0xf]
    %v1214 = vld [vmem:[#allocation2 + $0x21c] sm:$0xf]
    %v1215 = vld [vmem:[#allocation2 + $0x220] sm:$0xf]
    %v1216 = vld [vmem:[#allocation2 + $0x224] sm:$0xf]
    %v1217 = vld [vmem:[#allocation2 + $0x228] sm:$0xf]
    %v1218 = vld [vmem:[#allocation2 + $0x22c] sm:$0xf]
    %v1219 = vld [vmem:[#allocation2 + $0x230] sm:$0xf]
    %v1220 = vld [vmem:[#allocation2 + $0x234] sm:$0xf]
    %v1221 = vld [vmem:[#allocation2 + $0x238] sm:$0xf]
    %v1222 = vld [vmem:[#allocation2 + $0x23c] sm:$0xf]
    %v1239 = vunpack.c.l.b16 %v1207
    %v1240 = vunpack.c.l.b16 %v1208
    %v1241 = vunpack.c.l.b16 %v1209
    %v1242 = vunpack.c.l.b16 %v1210
    %v1243 = vunpack.c.l.b16 %v1211
    %v1244 = vunpack.c.l.b16 %v1212
    %v1245 = vunpack.c.l.b16 %v1213
    %v1246 = vunpack.c.l.b16 %v1214
    %v1247 = vunpack.c.l.b16 %v1215
    %v1248 = vunpack.c.l.b16 %v1216
    %v1249 = vunpack.c.l.b16 %v1217
    %v1250 = vunpack.c.l.b16 %v1218
    %v1251 = vunpack.c.l.b16 %v1219
    %v1252 = vunpack.c.l.b16 %v1220
    %v1253 = vunpack.c.l.b16 %v1221
    %v1254 = vunpack.c.l.b16 %v1222
    %v1255 = vpack.c.b16 %v1240, %v1239
    %v1256 = vpack.c.b16 %v1242, %v1241
    %v1257 = vpack.c.b16 %v1244, %v1243
    %v1258 = vpack.c.b16 %v1246, %v1245
    %v1259 = vpack.c.b16 %v1248, %v1247
    %v1260 = vpack.c.b16 %v1250, %v1249
    %v1261 = vpack.c.b16 %v1252, %v1251
    %v1262 = vpack.c.b16 %v1254, %v1253
    %1271 = vmatprep.subr.bf16.mxu0 0
    %1272 = vmatpush1.bf16.msra.mxu0 %v1262
    %1273 = vmatprep.subr.bf16.mxu0 0
    %1274 = vmatpush1.bf16.msra.mxu0 %v1261
    %1275 = vmatprep.subr.bf16.mxu0 0
    %1276 = vmatpush1.bf16.msra.mxu0 %v1260
    %1277 = vmatprep.subr.bf16.mxu0 0
    %1278 = vmatpush1.bf16.msra.mxu0 %v1259
    %1279 = vmatprep.subr.bf16.mxu0 0
    %1280 = vmatpush1.bf16.msra.mxu0 %v1258
    %1281 = vmatprep.subr.bf16.mxu0 0
    %1282 = vmatpush1.bf16.msra.mxu0 %v1257
    %1283 = vmatprep.subr.bf16.mxu0 0
    %1284 = vmatpush1.bf16.msra.mxu0 %v1256
    %1285 = vmatprep.subr.bf16.mxu0 0
    %1286 = vmatpush1.bf16.msra.mxu0 %v1255
    %1287 = vmatprep.subr.bf16.mxu0 0
    %1288 = vmatpush2.bf16.msra.mxu0 0
    %1289 = vmatprep.subr.bf16.mxu0 0
    %1290 = vmatpush2.bf16.msra.mxu0 0
    %1291 = vmatprep.subr.bf16.mxu0 0
    %1292 = vmatpush2.bf16.msra.mxu0 0
    %1293 = vmatprep.subr.bf16.mxu0 0
    %1294 = vmatpush2.bf16.msra.mxu0 0
    %1295 = vmatprep.subr.bf16.mxu0 0
    %1296 = vmatpush2.bf16.msra.mxu0 0
    %1297 = vmatprep.subr.bf16.mxu0 0
    %1298 = vmatpush2.bf16.msra.mxu0 0
    %1299 = vmatprep.subr.bf16.mxu0 0
    %1300 = vmatpush2.bf16.msra.mxu0 0
    %1301 = vmatprep.subr.bf16.mxu0 0
    %1302 = vmatpush2.bf16.msra.mxu0 0
    %1303 = vmatprep.mubr.bf16.mxu0 0
    %1304 = vmatmul.mubr.bf16.gmra.mxu0 %v1205
    %v1305 = vpop.f32.mrf.mxu0
    %v1306 = vadd.f32 0.0, %v1305
    %v1307 = vpop.f32.mrf.mxu0
    %v1308 = vpop.f32.mrf.mxu0
    %v1309 = vadd.f32 0.0, %v1308
    %v1310 = vpop.f32.mrf.mxu0
    %1311 = vmatprep.mubr.bf16.mxu0 0
    %1312 = vmatmul.mubr.bf16.gmra.mxu0 %v1206
    %v1313 = vpop.f32.mrf.mxu0
    %v1314 = vadd.f32 0.0, %v1313
    %v1315 = vpop.f32.mrf.mxu0
    %v1316 = vpop.f32.mrf.mxu0
    %v1317 = vpop.f32.mrf.mxu0
    %1318 = vdwg.mxu0
    %v1335 = vunpack.c.l.b16 %v1189
    %v1336 = vunpack.c.l.b16 %v1190
    %v1337 = vunpack.c.l.b16 %v1191
    %v1338 = vunpack.c.l.b16 %v1192
    %v1339 = vunpack.c.l.b16 %v1193
    %v1340 = vunpack.c.l.b16 %v1194
    %v1341 = vunpack.c.l.b16 %v1195
    %v1342 = vunpack.c.l.b16 %v1196
    %v1343 = vunpack.c.l.b16 %v1197
    %v1344 = vunpack.c.l.b16 %v1198
    %v1345 = vunpack.c.l.b16 %v1199
    %v1346 = vunpack.c.l.b16 %v1200
    %v1347 = vunpack.c.l.b16 %v1201
    %v1348 = vunpack.c.l.b16 %v1202
    %v1349 = vunpack.c.l.b16 %v1203
    %v1350 = vunpack.c.l.b16 %v1204
    %v1351 = vpack.c.b16 %v1336, %v1335
    %v1352 = vpack.c.b16 %v1338, %v1337
    %v1353 = vpack.c.b16 %v1340, %v1339
    %v1354 = vpack.c.b16 %v1342, %v1341
    %v1355 = vpack.c.b16 %v1344, %v1343
    %v1356 = vpack.c.b16 %v1346, %v1345
    %v1357 = vpack.c.b16 %v1348, %v1347
    %v1358 = vpack.c.b16 %v1350, %v1349
    %1367 = vmatprep.subr.bf16.mxu0 0
    %1368 = vmatpush1.bf16.msra.mxu0 %v1358
    %1369 = vmatprep.subr.bf16.mxu0 0
    %1370 = vmatpush1.bf16.msra.mxu0 %v1357
    %1371 = vmatprep.subr.bf16.mxu0 0
    %1372 = vmatpush1.bf16.msra.mxu0 %v1356
    %1373 = vmatprep.subr.bf16.mxu0 0
    %1374 = vmatpush1.bf16.msra.mxu0 %v1355
    %1375 = vmatprep.subr.bf16.mxu0 0
    %1376 = vmatpush1.bf16.msra.mxu0 %v1354
    %1377 = vmatprep.subr.bf16.mxu0 0
    %1378 = vmatpush1.bf16.msra.mxu0 %v1353
    %1379 = vmatprep.subr.bf16.mxu0 0
    %1380 = vmatpush1.bf16.msra.mxu0 %v1352
    %1381 = vmatprep.subr.bf16.mxu0 0
    %1382 = vmatpush1.bf16.msra.mxu0 %v1351
    %1383 = vmatprep.subr.bf16.mxu0 0
    %1384 = vmatpush2.bf16.msra.mxu0 0
    %1385 = vmatprep.subr.bf16.mxu0 0
    %1386 = vmatpush2.bf16.msra.mxu0 0
    %1387 = vmatprep.subr.bf16.mxu0 0
    %1388 = vmatpush2.bf16.msra.mxu0 0
    %1389 = vmatprep.subr.bf16.mxu0 0
    %1390 = vmatpush2.bf16.msra.mxu0 0
    %1391 = vmatprep.subr.bf16.mxu0 0
    %1392 = vmatpush2.bf16.msra.mxu0 0
    %1393 = vmatprep.subr.bf16.mxu0 0
    %1394 = vmatpush2.bf16.msra.mxu0 0
    %1395 = vmatprep.subr.bf16.mxu0 0
    %1396 = vmatpush2.bf16.msra.mxu0 0
    %1397 = vmatprep.subr.bf16.mxu0 0
    %1398 = vmatpush2.bf16.msra.mxu0 0
    %1399 = vmatprep.mubr.bf16.mxu0 0
    %1400 = vmatmul.mubr.bf16.gmra.mxu0 %v1187
    %v1401 = vpop.f32.mrf.mxu0
    %v1402 = vadd.f32 %v1306, %v1401
    %v1403 = vpop.f32.mrf.mxu0
    %v1404 = vpop.f32.mrf.mxu0
    %v1405 = vadd.f32 %v1309, %v1404
    %v1406 = vpop.f32.mrf.mxu0
    %1407 = vmatprep.mubr.bf16.mxu0 0
    %1408 = vmatmul.mubr.bf16.gmra.mxu0 %v1188
    %v1409 = vpop.f32.mrf.mxu0
    %v1410 = vadd.f32 %v1314, %v1409
    %v1411 = vpop.f32.mrf.mxu0
    %v1412 = vpop.f32.mrf.mxu0
    %v1413 = vpop.f32.mrf.mxu0
    %1414 = vdwg.mxu0
    %v1415 = vld [vmem:[%s4 + $0x5] sm:$0x1]
    %v1416 = vlaneseq
    %v1417 = vshrl.u32 %v1416, 7
    %v1418 = vsub.s32 0, %v1417
    %v1419 = vrot.slane %v1415, %v1418
    %v1420 = vadd.f32 %v1402, %v1419
    %v1421 = vadd.f32 %v1405, %v1419
    %v1422 = vadd.f32 %v1410, %v1419
    %v1423 = vmax.f32 %v1420, 0.0
    %v1424 = vmax.f32 %v1421, 0.0
    %v1425 = vmax.f32 %v1422, 0.0
    %v1426 = vpack.c.bf16 %v1424, %v1423
    %v1427 = vpack.c.bf16 %v1425, %v1425
    %v1428 = vld [vmem:[#allocation2 + $0x240] sm:$0xf]
    %v1429 = vld [vmem:[#allocation2 + $0x244] sm:$0xf]
    %v1430 = vld [vmem:[#allocation2 + $0x248] sm:$0xf]
    %v1431 = vld [vmem:[#allocation2 + $0x24c] sm:$0xf]
    %v1432 = vld [vmem:[#allocation2 + $0x250] sm:$0xf]
    %v1433 = vld [vmem:[#allocation2 + $0x254] sm:$0xf]
    %v1434 = vld [vmem:[#allocation2 + $0x258] sm:$0xf]
    %v1435 = vld [vmem:[#allocation2 + $0x25c] sm:$0xf]
    %v1436 = vld [vmem:[#allocation2 + $0x260] sm:$0xf]
    %v1437 = vld [vmem:[#allocation2 + $0x264] sm:$0xf]
    %v1438 = vld [vmem:[#allocation2 + $0x268] sm:$0xf]
    %v1439 = vld [vmem:[#allocation2 + $0x26c] sm:$0xf]
    %v1440 = vld [vmem:[#allocation2 + $0x270] sm:$0xf]
    %v1441 = vld [vmem:[#allocation2 + $0x274] sm:$0xf]
    %v1442 = vld [vmem:[#allocation2 + $0x278] sm:$0xf]
    %v1443 = vld [vmem:[#allocation2 + $0x27c] sm:$0xf]
    %v1444 = vld [vmem:[%s4 + $0x6] sm:$0x1]
    %v1445 = vlaneseq
    %v1446 = vshrl.u32 %v1445, 7
    %v1447 = vsub.s32 0, %v1446
    %v1448 = vrot.slane %v1444, %v1447
    %v1465 = vunpack.c.l.b16 %v1428
    %v1466 = vunpack.c.l.b16 %v1429
    %v1467 = vunpack.c.l.b16 %v1430
    %v1468 = vunpack.c.l.b16 %v1431
    %v1469 = vunpack.c.l.b16 %v1432
    %v1470 = vunpack.c.l.b16 %v1433
    %v1471 = vunpack.c.l.b16 %v1434
    %v1472 = vunpack.c.l.b16 %v1435
    %v1473 = vunpack.c.l.b16 %v1436
    %v1474 = vunpack.c.l.b16 %v1437
    %v1475 = vunpack.c.l.b16 %v1438
    %v1476 = vunpack.c.l.b16 %v1439
    %v1477 = vunpack.c.l.b16 %v1440
    %v1478 = vunpack.c.l.b16 %v1441
    %v1479 = vunpack.c.l.b16 %v1442
    %v1480 = vunpack.c.l.b16 %v1443
    %v1481 = vpack.c.b16 %v1466, %v1465
    %v1482 = vpack.c.b16 %v1468, %v1467
    %v1483 = vpack.c.b16 %v1470, %v1469
    %v1484 = vpack.c.b16 %v1472, %v1471
    %v1485 = vpack.c.b16 %v1474, %v1473
    %v1486 = vpack.c.b16 %v1476, %v1475
    %v1487 = vpack.c.b16 %v1478, %v1477
    %v1488 = vpack.c.b16 %v1480, %v1479
    %1497 = vmatprep.subr.bf16.mxu0 0
    %1498 = vmatpush1.bf16.msra.mxu0 %v1488
    %1499 = vmatprep.subr.bf16.mxu0 0
    %1500 = vmatpush1.bf16.msra.mxu0 %v1487
    %1501 = vmatprep.subr.bf16.mxu0 0
    %1502 = vmatpush1.bf16.msra.mxu0 %v1486
    %1503 = vmatprep.subr.bf16.mxu0 0
    %1504 = vmatpush1.bf16.msra.mxu0 %v1485
    %1505 = vmatprep.subr.bf16.mxu0 0
    %1506 = vmatpush1.bf16.msra.mxu0 %v1484
    %1507 = vmatprep.subr.bf16.mxu0 0
    %1508 = vmatpush1.bf16.msra.mxu0 %v1483
    %1509 = vmatprep.subr.bf16.mxu0 0
    %1510 = vmatpush1.bf16.msra.mxu0 %v1482
    %1511 = vmatprep.subr.bf16.mxu0 0
    %1512 = vmatpush1.bf16.msra.mxu0 %v1481
    %1513 = vmatprep.subr.bf16.mxu0 0
    %1514 = vmatpush2.bf16.msra.mxu0 0
    %1515 = vmatprep.subr.bf16.mxu0 0
    %1516 = vmatpush2.bf16.msra.mxu0 0
    %1517 = vmatprep.subr.bf16.mxu0 0
    %1518 = vmatpush2.bf16.msra.mxu0 0
    %1519 = vmatprep.subr.bf16.mxu0 0
    %1520 = vmatpush2.bf16.msra.mxu0 0
    %1521 = vmatprep.subr.bf16.mxu0 0
    %1522 = vmatpush2.bf16.msra.mxu0 0
    %1523 = vmatprep.subr.bf16.mxu0 0
    %1524 = vmatpush2.bf16.msra.mxu0 0
    %1525 = vmatprep.subr.bf16.mxu0 0
    %1526 = vmatpush2.bf16.msra.mxu0 0
    %1527 = vmatprep.subr.bf16.mxu0 0
    %1528 = vmatpush2.bf16.msra.mxu0 0
    %1529 = vmatprep.mubr.bf16.mxu0 0
    %1530 = vmatmul.mubr.bf16.gmra.mxu0 %v1426
    %v1531 = vpop.f32.mrf.mxu0
    %v1532 = vadd.f32 %v1448, %v1531
    %v1533 = vpop.f32.mrf.mxu0
    %v1534 = vpop.f32.mrf.mxu0
    %v1535 = vadd.f32 %v1448, %v1534
    %v1536 = vpop.f32.mrf.mxu0
    %1537 = vmatprep.mubr.bf16.mxu0 0
    %1538 = vmatmul.mubr.bf16.gmra.mxu0 %v1427
    %v1539 = vpop.f32.mrf.mxu0
    %v1540 = vadd.f32 %v1448, %v1539
    %v1541 = vpop.f32.mrf.mxu0
    %v1542 = vpop.f32.mrf.mxu0
    %v1543 = vpop.f32.mrf.mxu0
    %1544 = vdwg.mxu0
    %1548 = vrot.lane.b32.xlu0 %v1532, 127
    %v1549 = vpop.permute.xlu0 %1548
    %1550 = vrot.lane.b32.xlu0 %v1535, 127
    %v1551 = vpop.permute.xlu0 %1550
    %1552 = vrot.lane.b32.xlu0 %v1540, 127
    %v1553 = vpop.permute.xlu0 %1552
    %v1557 = vmax.f32 %v1532, %v1549
    %v1558 = vmax.f32 %v1535, %v1551
    %v1559 = vmax.f32 %v1540, %v1553
    %v1560 = vsub.f32 %v1532, %v1557
    %v1561 = vsub.f32 %v1535, %v1558
    %v1562 = vsub.f32 %v1540, %v1559
    %v1563 = vmul.f32 %v1560, 1.442695
    %v1564 = vpow.pop %v1563
    %v1565 = vmul.f32 %v1561, 1.442695
    %v1566 = vpow.pop %v1565
    %v1567 = vmul.f32 %v1562, 1.442695
    %v1568 = vpow.pop %v1567
    %1572 = vrot.lane.b32.xlu0 %v1557, 1
    %v1573 = vpop.permute.xlu0 %1572
    %1574 = vrot.lane.b32.xlu0 %v1558, 1
    %v1575 = vpop.permute.xlu0 %1574
    %1576 = vrot.lane.b32.xlu0 %v1559, 1
    %v1577 = vpop.permute.xlu0 %1576
    %v1581 = vsub.f32 %v1532, %v1573
    %v1582 = vsub.f32 %v1535, %v1575
    %v1583 = vsub.f32 %v1540, %v1577
    %v1584 = vmul.f32 %v1581, 1.442695
    %v1585 = vpow.pop %v1584
    %v1586 = vmul.f32 %v1582, 1.442695
    %v1587 = vpow.pop %v1586
    %v1588 = vmul.f32 %v1583, 1.442695
    %v1589 = vpow.pop %v1588
    %1593 = vrot.lane.b32.xlu0 %v1585, 127
    %v1594 = vpop.permute.xlu0 %1593
    %1595 = vrot.lane.b32.xlu0 %v1587, 127
    %v1596 = vpop.permute.xlu0 %1595
    %1597 = vrot.lane.b32.xlu0 %v1589, 127
    %v1598 = vpop.permute.xlu0 %1597
    %v1602 = vadd.f32 %v1564, %v1594
    %v1603 = vadd.f32 %v1566, %v1596
    %v1604 = vadd.f32 %v1568, %v1598
    %v1605 = vrcp.pop %v1602
    %v1606 = vrcp.pop %v1603
    %v1607 = vrcp.pop %v1604
    %v1608 = vmul.f32 %v1564, %v1605
    %v1609 = vmul.f32 %v1566, %v1606
    %v1610 = vmul.f32 %v1568, %v1607
    %1612 = vset.pattern.permute.xlu0 0
    %1613 = vperm.xlu0 %1612, %v1608
    %v1614 = vpop.permute.xlu0 %1613
    %1617 = vset.pattern.permute.xlu0 0
    %1618 = vperm.xlu0 %1617, %v1609
    %v1619 = vpop.permute.xlu0 %1618
    %1622 = vset.pattern.permute.xlu0 0
    %1623 = vperm.xlu0 %1622, %v1610
    %v1624 = vpop.permute.xlu0 %1623
    %v1626 = vmul.f32 %v1614, %v459
    %v1627 = vmul.f32 %v1619, %v460
    %v1628 = vmul.f32 %v1624, %v461
    %1632 = vrot.lane.b32.xlu0 %v1605, 1
    %v1633 = vpop.permute.xlu0 %1632
    %1634 = vrot.lane.b32.xlu0 %v1606, 1
    %v1635 = vpop.permute.xlu0 %1634
    %1636 = vrot.lane.b32.xlu0 %v1607, 1
    %v1637 = vpop.permute.xlu0 %1636
    %v1641 = vmul.f32 %v1585, %v1633
    %v1642 = vmul.f32 %v1587, %v1635
    %v1643 = vmul.f32 %v1589, %v1637
    %1645 = vset.pattern.permute.xlu0 1
    %1646 = vperm.xlu0 %1645, %v1641
    %v1647 = vpop.permute.xlu0 %1646
    %1650 = vset.pattern.permute.xlu0 1
    %1651 = vperm.xlu0 %1650, %v1642
    %v1652 = vpop.permute.xlu0 %1651
    %1655 = vset.pattern.permute.xlu0 1
    %1656 = vperm.xlu0 %1655, %v1643
    %v1657 = vpop.permute.xlu0 %1656
    %v1659 = vmul.f32 %v1647, %v1184
    %v1660 = vmul.f32 %v1652, %v1185
    %v1661 = vmul.f32 %v1657, %v1186
    %v1662 = vadd.f32 %v1626, %v1659
    %v1663 = vadd.f32 %v1627, %v1660
    %v1664 = vadd.f32 %v1628, %v1661
    %1665 = vst [vmem:[#allocation5] sm:$0xff] %v457
    %1666 = vst [vmem:[#allocation5 + $0x8] sm:$0xff] %v458
    %1667 = vst [vmem:[#allocation6] sm:$0xff] %v1662
    %1668 = vst [vmem:[#allocation6 + $0x8] sm:$0xff] %v1663
    %1669 = vst [vmem:[#allocation6 + $0x10] sm:$0xff] %v1664
    %v1670 = vld [vmem:[%s5] sm:$0x1]
    %v1671 = vld [vmem:[%s5 + $0x1] sm:$0x1]
    %v1672 = vlaneseq
    %v1673 = vshrl.u32 %v1672, 7
    %v1674 = vadd.s32 %v1673, 8
    %v1675 = vlaneseq
    %v1676 = vshrl.u32 %v1675, 7
    %v1677 = vsub.s32 0, %v1676
    %v1678 = vrot.slane %v1670, %v1677
    %vm1679 = vcmp.eq.s32.totalorder %v1673, %v1678
    %vm1680 = vcmp.eq.s32.totalorder %v1674, %v1678
    %v1681 = vsel %vm1679, 1, 0
    %v1682 = vsel %vm1680, 1, 0
    %v1683 = vcvt.s32.f32 %v1681
    %v1684 = vcvt.s32.f32 %v1682
    %v1685 = vpack.c.bf16 %v1684, %v1683
    %v1686 = vadd.s32 %v1673, 16
    %v1687 = vlaneseq
    %v1688 = vshrl.u32 %v1687, 7
    %v1689 = vsub.s32 0, %v1688
    %v1690 = vrot.slane %v1671, %v1689
    %vm1691 = vcmp.eq.s32.totalorder %v1673, %v1690
    %vm1692 = vcmp.eq.s32.totalorder %v1674, %v1690
    %vm1693 = vcmp.eq.s32.totalorder %v1686, %v1690
    %v1694 = vsel %vm1691, 1, 0
    %v1695 = vsel %vm1692, 1, 0
    %v1696 = vsel %vm1693, 1, 0
    %v1697 = vcvt.s32.f32 %v1694
    %v1698 = vcvt.s32.f32 %v1695
    %v1699 = vcvt.s32.f32 %v1696
    %v1700 = vpack.c.bf16 %v1698, %v1697
    %v1701 = vpack.c.bf16 %v1699, %v1699
    %v1702 = vpack.c.bf16 %v458, %v457
    %1703 = vxpose.xlu0.c.b16.start [1/8] %v1685, 128
    %1704 = vxpose.xlu0.c.b16.cont [2/8] 0, 128
    %1705 = vxpose.xlu0.c.b16.cont [3/8] 0, 128
    %1706 = vxpose.xlu0.c.b16.cont [4/8] 0, 128
    %1707 = vxpose.xlu0.c.b16.cont [5/8] 0, 128
    %1708 = vxpose.xlu0.c.b16.cont [6/8] 0, 128
    %1709 = vxpose.xlu0.c.b16.cont [7/8] 0, 128
    %1710 = vxpose.xlu0.c.b16.end [8/8] 0, 128
    %v1711 = vpop.trf.xlu0
    %v1712 = vpop.trf.xlu0
    %v1713 = vpop.trf.xlu0
    %v1714 = vpop.trf.xlu0
    %v1715 = vpop.trf.xlu0
    %v1716 = vpop.trf.xlu0
    %v1717 = vpop.trf.xlu0
    %v1718 = vpop.trf.xlu0
    %vm1719 = vcmask 130048
    %v1721 = vsel %vm1719, %v1711, 0
    %v1724 = vsel %vm1719, %v1712, 0
    %v1727 = vsel %vm1719, %v1713, 0
    %v1730 = vsel %vm1719, %v1714, 0
    %v1733 = vsel %vm1719, %v1715, 0
    %v1736 = vsel %vm1719, %v1716, 0
    %v1739 = vsel %vm1719, %v1717, 0
    %v1742 = vsel %vm1719, %v1718, 0
    %1744 = vmatprep.subr.bf16.mxu0 0
    %1745 = vmatpush1.bf16.msra.mxu0 0
    %1746 = vmatprep.subr.bf16.mxu0 0
    %1747 = vmatpush1.bf16.msra.mxu0 0
    %1748 = vmatprep.subr.bf16.mxu0 0
    %1749 = vmatpush1.bf16.msra.mxu0 0
    %1750 = vmatprep.subr.bf16.mxu0 0
    %1751 = vmatpush1.bf16.msra.mxu0 0
    %1752 = vmatprep.subr.bf16.mxu0 0
    %1753 = vmatpush1.bf16.msra.mxu0 0
    %1754 = vmatprep.subr.bf16.mxu0 0
    %1755 = vmatpush1.bf16.msra.mxu0 0
    %1756 = vmatprep.subr.bf16.mxu0 0
    %1757 = vmatpush1.bf16.msra.mxu0 0
    %1758 = vmatprep.subr.bf16.mxu0 0
    %1759 = vmatpush1.bf16.msra.mxu0 %v1702
    %1760 = vmatprep.subr.bf16.mxu0 0
    %1761 = vmatpush2.bf16.msra.mxu0 0
    %1762 = vmatprep.subr.bf16.mxu0 0
    %1763 = vmatpush2.bf16.msra.mxu0 0
    %1764 = vmatprep.subr.bf16.mxu0 0
    %1765 = vmatpush2.bf16.msra.mxu0 0
    %1766 = vmatprep.subr.bf16.mxu0 0
    %1767 = vmatpush2.bf16.msra.mxu0 0
    %1768 = vmatprep.subr.bf16.mxu0 0
    %1769 = vmatpush2.bf16.msra.mxu0 0
    %1770 = vmatprep.subr.bf16.mxu0 0
    %1771 = vmatpush2.bf16.msra.mxu0 0
    %1772 = vmatprep.subr.bf16.mxu0 0
    %1773 = vmatpush2.bf16.msra.mxu0 0
    %1774 = vmatprep.subr.bf16.mxu0 0
    %1775 = vmatpush2.bf16.msra.mxu0 0
    %1776 = vmatprep.mubr.bf16.mxu0 0
    %1777 = vmatmul.mubr.bf16.gmra.mxu0 %v1721
    %v1778 = vpop.f32.mrf.mxu0
    %v1779 = vadd.f32 0.0, %v1778
    %v1780 = vpop.f32.mrf.mxu0
    %v1781 = vpop.f32.mrf.mxu0
    %v1782 = vadd.f32 0.0, %v1781
    %v1783 = vpop.f32.mrf.mxu0
    %1784 = vmatprep.mubr.bf16.mxu0 0
    %1785 = vmatmul.mubr.bf16.gmra.mxu0 %v1724
    %v1786 = vpop.f32.mrf.mxu0
    %v1787 = vadd.f32 0.0, %v1786
    %v1788 = vpop.f32.mrf.mxu0
    %v1789 = vpop.f32.mrf.mxu0
    %v1790 = vadd.f32 0.0, %v1789
    %v1791 = vpop.f32.mrf.mxu0
    %1792 = vmatprep.mubr.bf16.mxu0 0
    %1793 = vmatmul.mubr.bf16.gmra.mxu0 %v1727
    %v1794 = vpop.f32.mrf.mxu0
    %v1795 = vadd.f32 0.0, %v1794
    %v1796 = vpop.f32.mrf.mxu0
    %v1797 = vpop.f32.mrf.mxu0
    %v1798 = vadd.f32 0.0, %v1797
    %v1799 = vpop.f32.mrf.mxu0
    %1800 = vmatprep.mubr.bf16.mxu0 0
    %1801 = vmatmul.mubr.bf16.gmra.mxu0 %v1730
    %v1802 = vpop.f32.mrf.mxu0
    %v1803 = vadd.f32 0.0, %v1802
    %v1804 = vpop.f32.mrf.mxu0
    %v1805 = vpop.f32.mrf.mxu0
    %v1806 = vadd.f32 0.0, %v1805
    %v1807 = vpop.f32.mrf.mxu0
    %1808 = vmatprep.mubr.bf16.mxu0 0
    %1809 = vmatmul.mubr.bf16.gmra.mxu0 %v1733
    %v1810 = vpop.f32.mrf.mxu0
    %v1811 = vadd.f32 0.0, %v1810
    %v1812 = vpop.f32.mrf.mxu0
    %v1813 = vpop.f32.mrf.mxu0
    %v1814 = vadd.f32 0.0, %v1813
    %v1815 = vpop.f32.mrf.mxu0
    %1816 = vmatprep.mubr.bf16.mxu0 0
    %1817 = vmatmul.mubr.bf16.gmra.mxu0 %v1736
    %v1818 = vpop.f32.mrf.mxu0
    %v1819 = vadd.f32 0.0, %v1818
    %v1820 = vpop.f32.mrf.mxu0
    %v1821 = vpop.f32.mrf.mxu0
    %v1822 = vadd.f32 0.0, %v1821
    %v1823 = vpop.f32.mrf.mxu0
    %1824 = vmatprep.mubr.bf16.mxu0 0
    %1825 = vmatmul.mubr.bf16.gmra.mxu0 %v1739
    %v1826 = vpop.f32.mrf.mxu0
    %v1827 = vadd.f32 0.0, %v1826
    %v1828 = vpop.f32.mrf.mxu0
    %v1829 = vpop.f32.mrf.mxu0
    %v1830 = vadd.f32 0.0, %v1829
    %v1831 = vpop.f32.mrf.mxu0
    %1832 = vmatprep.mubr.bf16.mxu0 0
    %1833 = vmatmul.mubr.bf16.gmra.mxu0 %v1742
    %v1834 = vpop.f32.mrf.mxu0
    %v1835 = vadd.f32 0.0, %v1834
    %v1836 = vpop.f32.mrf.mxu0
    %v1837 = vpop.f32.mrf.mxu0
    %v1838 = vadd.f32 0.0, %v1837
    %v1839 = vpop.f32.mrf.mxu0
    %1840 = vdwg.mxu0
    %v1841 = vpack.c.bf16 %v1663, %v1662
    %v1842 = vpack.c.bf16 %v1664, %v1664
    %1843 = vxpose.xlu0.c.b16.start [1/8] %v1700, 128
    %1844 = vxpose.xlu0.c.b16.cont [2/8] %v1701, 128
    %1845 = vxpose.xlu0.c.b16.cont [3/8] 0, 128
    %1846 = vxpose.xlu0.c.b16.cont [4/8] 0, 128
    %1847 = vxpose.xlu0.c.b16.cont [5/8] 0, 128
    %1848 = vxpose.xlu0.c.b16.cont [6/8] 0, 128
    %1849 = vxpose.xlu0.c.b16.cont [7/8] 0, 128
    %1850 = vxpose.xlu0.c.b16.end [8/8] 0, 128
    %v1851 = vpop.trf.xlu0
    %v1852 = vpop.trf.xlu0
    %v1853 = vpop.trf.xlu0
    %v1854 = vpop.trf.xlu0
    %v1855 = vpop.trf.xlu0
    %v1856 = vpop.trf.xlu0
    %v1857 = vpop.trf.xlu0
    %v1858 = vpop.trf.xlu0
    %v1860 = vsel %vm602, %v1851, 0
    %v1863 = vsel %vm602, %v1852, 0
    %v1866 = vsel %vm602, %v1853, 0
    %v1869 = vsel %vm602, %v1854, 0
    %v1872 = vsel %vm602, %v1855, 0
    %v1875 = vsel %vm602, %v1856, 0
    %v1878 = vsel %vm602, %v1857, 0
    %v1881 = vsel %vm602, %v1858, 0
    %v1884 = vsel %vm325, %v1842, 0
    %1886 = vmatprep.subr.bf16.mxu0 0
    %1887 = vmatpush1.bf16.msra.mxu0 0
    %1888 = vmatprep.subr.bf16.mxu0 0
    %1889 = vmatpush1.bf16.msra.mxu0 0
    %1890 = vmatprep.subr.bf16.mxu0 0
    %1891 = vmatpush1.bf16.msra.mxu0 0
    %1892 = vmatprep.subr.bf16.mxu0 0
    %1893 = vmatpush1.bf16.msra.mxu0 0
    %1894 = vmatprep.subr.bf16.mxu0 0
    %1895 = vmatpush1.bf16.msra.mxu0 0
    %1896 = vmatprep.subr.bf16.mxu0 0
    %1897 = vmatpush1.bf16.msra.mxu0 0
    %1898 = vmatprep.subr.bf16.mxu0 0
    %1899 = vmatpush1.bf16.msra.mxu0 %v1884
    %1900 = vmatprep.subr.bf16.mxu0 0
    %1901 = vmatpush1.bf16.msra.mxu0 %v1841
    %1902 = vmatprep.subr.bf16.mxu0 0
    %1903 = vmatpush2.bf16.msra.mxu0 0
    %1904 = vmatprep.subr.bf16.mxu0 0
    %1905 = vmatpush2.bf16.msra.mxu0 0
    %1906 = vmatprep.subr.bf16.mxu0 0
    %1907 = vmatpush2.bf16.msra.mxu0 0
    %1908 = vmatprep.subr.bf16.mxu0 0
    %1909 = vmatpush2.bf16.msra.mxu0 0
    %1910 = vmatprep.subr.bf16.mxu0 0
    %1911 = vmatpush2.bf16.msra.mxu0 0
    %1912 = vmatprep.subr.bf16.mxu0 0
    %1913 = vmatpush2.bf16.msra.mxu0 0
    %1914 = vmatprep.subr.bf16.mxu0 0
    %1915 = vmatpush2.bf16.msra.mxu0 0
    %1916 = vmatprep.subr.bf16.mxu0 0
    %1917 = vmatpush2.bf16.msra.mxu0 0
    %1918 = vmatprep.mubr.bf16.mxu0 0
    %1919 = vmatmul.mubr.bf16.gmra.mxu0 %v1860
    %v1920 = vpop.f32.mrf.mxu0
    %v1921 = vadd.f32 0.0, %v1920
    %v1922 = vpop.f32.mrf.mxu0
    %v1923 = vpop.f32.mrf.mxu0
    %v1924 = vadd.f32 0.0, %v1923
    %v1925 = vpop.f32.mrf.mxu0
    %1926 = vmatprep.mubr.bf16.mxu0 0
    %1927 = vmatmul.mubr.bf16.gmra.mxu0 %v1863
    %v1928 = vpop.f32.mrf.mxu0
    %v1929 = vadd.f32 0.0, %v1928
    %v1930 = vpop.f32.mrf.mxu0
    %v1931 = vpop.f32.mrf.mxu0
    %v1932 = vadd.f32 0.0, %v1931
    %v1933 = vpop.f32.mrf.mxu0
    %1934 = vmatprep.mubr.bf16.mxu0 0
    %1935 = vmatmul.mubr.bf16.gmra.mxu0 %v1866
    %v1936 = vpop.f32.mrf.mxu0
    %v1937 = vadd.f32 0.0, %v1936
    %v1938 = vpop.f32.mrf.mxu0
    %v1939 = vpop.f32.mrf.mxu0
    %v1940 = vadd.f32 0.0, %v1939
    %v1941 = vpop.f32.mrf.mxu0
    %1942 = vmatprep.mubr.bf16.mxu0 0
    %1943 = vmatmul.mubr.bf16.gmra.mxu0 %v1869
    %v1944 = vpop.f32.mrf.mxu0
    %v1945 = vadd.f32 0.0, %v1944
    %v1946 = vpop.f32.mrf.mxu0
    %v1947 = vpop.f32.mrf.mxu0
    %v1948 = vadd.f32 0.0, %v1947
    %v1949 = vpop.f32.mrf.mxu0
    %1950 = vmatprep.mubr.bf16.mxu0 0
    %1951 = vmatmul.mubr.bf16.gmra.mxu0 %v1872
    %v1952 = vpop.f32.mrf.mxu0
    %v1953 = vadd.f32 0.0, %v1952
    %v1954 = vpop.f32.mrf.mxu0
    %v1955 = vpop.f32.mrf.mxu0
    %v1956 = vadd.f32 0.0, %v1955
    %v1957 = vpop.f32.mrf.mxu0
    %1958 = vmatprep.mubr.bf16.mxu0 0
    %1959 = vmatmul.mubr.bf16.gmra.mxu0 %v1875
    %v1960 = vpop.f32.mrf.mxu0
    %v1961 = vadd.f32 0.0, %v1960
    %v1962 = vpop.f32.mrf.mxu0
    %v1963 = vpop.f32.mrf.mxu0
    %v1964 = vadd.f32 0.0, %v1963
    %v1965 = vpop.f32.mrf.mxu0
    %1966 = vmatprep.mubr.bf16.mxu0 0
    %1967 = vmatmul.mubr.bf16.gmra.mxu0 %v1878
    %v1968 = vpop.f32.mrf.mxu0
    %v1969 = vadd.f32 0.0, %v1968
    %v1970 = vpop.f32.mrf.mxu0
    %v1971 = vpop.f32.mrf.mxu0
    %v1972 = vadd.f32 0.0, %v1971
    %v1973 = vpop.f32.mrf.mxu0
    %1974 = vmatprep.mubr.bf16.mxu0 0
    %1975 = vmatmul.mubr.bf16.gmra.mxu0 %v1881
    %v1976 = vpop.f32.mrf.mxu0
    %v1977 = vadd.f32 0.0, %v1976
    %v1978 = vpop.f32.mrf.mxu0
    %v1979 = vpop.f32.mrf.mxu0
    %v1980 = vadd.f32 0.0, %v1979
    %v1981 = vpop.f32.mrf.mxu0
    %1982 = vdwg.mxu0
    %v1983 = vmul.f32 %v1779, %v1921
    %v1984 = vmul.f32 %v1782, %v1924
    %v1985 = vmul.f32 %v1787, %v1929
    %v1986 = vmul.f32 %v1790, %v1932
    %v1987 = vmul.f32 %v1795, %v1937
    %v1988 = vmul.f32 %v1798, %v1940
    %v1989 = vmul.f32 %v1803, %v1945
    %v1990 = vmul.f32 %v1806, %v1948
    %v1991 = vmul.f32 %v1811, %v1953
    %v1992 = vmul.f32 %v1814, %v1956
    %v1993 = vmul.f32 %v1819, %v1961
    %v1994 = vmul.f32 %v1822, %v1964
    %v1995 = vmul.f32 %v1827, %v1969
    %v1996 = vmul.f32 %v1830, %v1972
    %v1997 = vmul.f32 %v1835, %v1977
    %v1998 = vmul.f32 %v1838, %v1980
    %1999 = vmatprep.subr.mxu0 0.0
    %2000 = vmatpush1.xpose.msra.mxu0 %v1998
    %2001 = vmatprep.subr.mxu0 0.0
    %2002 = vmatpush1.xpose.msra.mxu0 %v1997
    %2003 = vmatprep.subr.mxu0 0.0
    %2004 = vmatpush1.xpose.msra.mxu0 %v1996
    %2005 = vmatprep.subr.mxu0 0.0
    %2006 = vmatpush1.xpose.msra.mxu0 %v1995
    %2007 = vmatprep.subr.mxu0 0.0
    %2008 = vmatpush1.xpose.msra.mxu0 %v1994
    %2009 = vmatprep.subr.mxu0 0.0
    %2010 = vmatpush1.xpose.msra.mxu0 %v1993
    %2011 = vmatprep.subr.mxu0 0.0
    %2012 = vmatpush1.xpose.msra.mxu0 %v1992
    %2013 = vmatprep.subr.mxu0 0.0
    %2014 = vmatpush1.xpose.msra.mxu0 %v1991
    %2015 = vmatprep.subr.mxu0 0.0
    %2016 = vmatpush1.xpose.msra.mxu0 %v1990
    %2017 = vmatprep.subr.mxu0 0.0
    %2018 = vmatpush1.xpose.msra.mxu0 %v1989
    %2019 = vmatprep.subr.mxu0 0.0
    %2020 = vmatpush1.xpose.msra.mxu0 %v1988
    %2021 = vmatprep.subr.mxu0 0.0
    %2022 = vmatpush1.xpose.msra.mxu0 %v1987
    %2023 = vmatprep.subr.mxu0 0.0
    %2024 = vmatpush1.xpose.msra.mxu0 %v1986
    %2025 = vmatprep.subr.mxu0 0.0
    %2026 = vmatpush1.xpose.msra.mxu0 %v1985
    %2027 = vmatprep.subr.mxu0 0.0
    %2028 = vmatpush1.xpose.msra.mxu0 %v1984
    %2029 = vmatprep.subr.mxu0 0.0
    %2030 = vmatpush1.xpose.msra.mxu0 %v1983
    %2031 = vmatprep.subr.mxu0 0.0
    %2032 = vmatpush2.xpose.msra.mxu0 0.0
    %2033 = vmatprep.subr.mxu0 0.0
    %2034 = vmatpush2.xpose.msra.mxu0 0.0
    %2035 = vmatprep.subr.mxu0 0.0
    %2036 = vmatpush2.xpose.msra.mxu0 0.0
    %2037 = vmatprep.subr.mxu0 0.0
    %2038 = vmatpush2.xpose.msra.mxu0 0.0
    %2039 = vmatprep.subr.mxu0 0.0
    %2040 = vmatpush2.xpose.msra.mxu0 0.0
    %2041 = vmatprep.subr.mxu0 0.0
    %2042 = vmatpush2.xpose.msra.mxu0 0.0
    %2043 = vmatprep.subr.mxu0 0.0
    %2044 = vmatpush2.xpose.msra.mxu0 0.0
    %2045 = vmatprep.subr.mxu0 0.0
    %2046 = vmatpush2.xpose.msra.mxu0 0.0
    %2047 = vmatprep.subr.mxu0 0.0
    %2048 = vmatpush2.xpose.msra.mxu0 0.0
    %2049 = vmatprep.subr.mxu0 0.0
    %2050 = vmatpush2.xpose.msra.mxu0 0.0
    %2051 = vmatprep.subr.mxu0 0.0
    %2052 = vmatpush2.xpose.msra.mxu0 0.0
    %2053 = vmatprep.subr.mxu0 0.0
    %2054 = vmatpush2.xpose.msra.mxu0 0.0
    %2055 = vmatprep.subr.mxu0 0.0
    %2056 = vmatpush2.xpose.msra.mxu0 0.0
    %2057 = vmatprep.subr.mxu0 0.0
    %2058 = vmatpush2.xpose.msra.mxu0 0.0
    %2059 = vmatprep.subr.mxu0 0.0
    %2060 = vmatpush2.xpose.msra.mxu0 0.0
    %2061 = vmatprep.subr.mxu0 0.0
    %2062 = vmatpush2.xpose.msra.mxu0 0.0
    %2063 = vmatprep.mubr.f32.mxu0 0.0
    %2064 = vmatmul.mubr.f32.gmra.mxu0 1.0
    %v2065 = vpop.f32.mrf.mxu0
    %v2066 = vadd.f32 0.0, %v2065
    %v2067 = vpop.f32.mrf.mxu0
    %2068 = vdwg.mxu0
    %2069 = vst [vmem:[%s8] sm:$0x1] %v2066
    // Predicated region
    $region30: #{dual_network_gnn_forward.1} parent=1 // pred_check
      _
    $region31: #{dual_network_gnn_forward.1} parent=1 // pred_check_branch
      %2071 = sbr.rel (0) target = $region33
    $region32: #{dual_network_gnn_forward.1} parent=1 // pred_region
      %s2073 = ssub.s32 256, 256
      %2074 = vsyncadd [#allocation4], %s2073
      %s2075 = sshll.u32 [#allocation5], 4
      %s2076 = int_to_ptr.vmem [resolvable:$true] %s2075
      %2081 = dma.vmem_to_hbm [thread:$0]  %s2076, 256, %s6, [#allocation4], 128, 128, 8
    $region33: #{dual_network_gnn_forward.1} parent=1 // pred_fallthru
      _
    // Predicated region
    $region34: #{dual_network_gnn_forward.1} parent=1 // pred_check
      _
    $region35: #{dual_network_gnn_forward.1} parent=1 // pred_check_branch
      %2083 = sbr.rel (0) target = $region37
    $region36: #{dual_network_gnn_forward.1} parent=1 // pred_region
      %s2085 = ssub.s32 384, 384
      %2086 = vsyncadd [#allocation7], %s2085
      %s2087 = sshll.u32 [#allocation6], 4
      %s2088 = int_to_ptr.vmem [resolvable:$true] %s2087
      %2093 = dma.vmem_to_hbm [thread:$0]  %s2088, 384, %s7, [#allocation7], 128, 128, 8
    $region37: #{dual_network_gnn_forward.1} parent=1 // pred_fallthru
      _
    // Predicated region
    $region38: #{dual_network_gnn_forward.1} parent=1 // pred_check
      _
    $region39: #{dual_network_gnn_forward.1} parent=1 // pred_check_branch
      %2095 = sbr.rel (0) target = $region41
    $region40: #{dual_network_gnn_forward.1} parent=1 // pred_region
      _
    $region41: #{dual_network_gnn_forward.1} parent=1 // pred_fallthru
      _
    // Predicated region
    $region42: #{dual_network_gnn_forward.1} parent=1 // pred_check
      _
    $region43: #{dual_network_gnn_forward.1} parent=1 // pred_check_branch
      %2097 = sbr.rel (0) target = $region45
    $region44: #{dual_network_gnn_forward.1} parent=1 // pred_region
      %2098 = dma.done [#allocation4], 256
    $region45: #{dual_network_gnn_forward.1} parent=1 // pred_fallthru
      _
    // Predicated region
    $region46: #{dual_network_gnn_forward.1} parent=1 // pred_check
      _
    $region47: #{dual_network_gnn_forward.1} parent=1 // pred_check_branch
      %2100 = sbr.rel (0) target = $region49
    $region48: #{dual_network_gnn_forward.1} parent=1 // pred_region
      %2101 = dma.done [#allocation7], 384
    $region49: #{dual_network_gnn_forward.1} parent=1 // pred_fallthru
      _
    // Predicated region
    $region50: #{dual_network_gnn_forward.1} parent=1 // pred_check
      _
    $region51: #{dual_network_gnn_forward.1} parent=1 // pred_check_branch
      %2103 = sbr.rel (0) target = $region53
    $region52: #{dual_network_gnn_forward.1} parent=1 // pred_region
      _
    $region53: #{dual_network_gnn_forward.1} parent=1 // pred_fallthru
      _
    %2104 = vsyncpa [#allocation3], 1
    %2105 = vsyncpa [#allocation4], 1
    %2106 = vsyncpa [#allocation7], 1

</llo_original>
